<compile_context>
chip_gen: v5e
topology: v5e:2x2
jax: 0.10.0
libtpu: 0.0.40
codegen_flags: <defaults>
</compile_context>

<pallas_src>
import functools

import jax
import jax.numpy as jnp
from jax.experimental import pallas as pl
from jax.experimental.pallas import tpu as pltpu

EPS = 1e-5  # PyTorch BatchNorm1d default eps


def res_module_kernel(x_ref, w1_ref, w2_ref, g1_ref, be1_ref, g2_ref, be2_ref, out_ref,
                      *, N, L, K1, K2, left1, left2, sum_with_input, matmul_dtype):
    NL = N * L
    inv_nl = 1.0 / float(NL)

    x = x_ref[...].astype(jnp.float32)                      # (N*L, Cin_pad) channels-last slab

    # Within-sample row index, hoisted once: row r = n*L + l  ->  l = r mod L.
    row = jax.lax.broadcasted_iota(jnp.int32, (NL, 1), 0)
    l_idx = jax.lax.rem(row, L)                              # (N*L, 1)

    def conv_same(src, w_ref, K, left):
        """'same' 1-D conv as K accumulated MXU dots over rolled + halo-masked activations.

        src: (N*L, Cin_p) f32.  w_ref: (K, Cin_p, Cout_p) in matmul_dtype.
        dest row r (= n*L + l) of tap k reads src row r + (k - left), zeroed when the source
        row falls outside sample n ('same' padding is per-batch-element).
        """
        Cout = w_ref.shape[-1]
        acc = jnp.zeros((NL, Cout), jnp.float32)
        for k in range(K):                                   # static unroll over taps
            shift = k - left
            if shift == 0:
                tap = src                                    # center tap: no roll, no halo
            else:
                # rolled[r] = src[(r + shift) mod NL]  (roll rides the otherwise-idle XLU slot)
                rolled = pltpu.roll(src, shift=(-shift) % NL, axis=0)
                valid = jnp.logical_and(l_idx + shift >= 0, l_idx + shift < L)
                tap = jnp.where(valid, rolled, 0.0)
            acc = acc + jnp.dot(tap.astype(matmul_dtype), w_ref[k],
                                preferred_element_type=jnp.float32)
        return acc

    def bn_relu(y, g_ref, be_ref):
        # Training-mode BN (biased batch variance, two-pass) with fused affine, then ReLU.
        # Pad channels: conv output is identically 0 there -> mean=0, centered=0, +beta(=0),
        # ReLU -> exactly 0, so pad lanes never pollute real lanes.
        mean = jnp.sum(y, axis=0, keepdims=True) * inv_nl
        centered = y - mean
        var = jnp.sum(centered * centered, axis=0, keepdims=True) * inv_nl
        scale = g_ref[...].astype(jnp.float32) * jax.lax.rsqrt(var + EPS)
        return jnp.maximum(centered * scale + be_ref[...].astype(jnp.float32), 0.0)

    # conv1 ('same') -> BN1 -> ReLU
    h1 = bn_relu(conv_same(x, w1_ref, K1, left1), g1_ref, be1_ref)       # (N*L, C1_pad)
    # conv2 ('same') -> BN2 -> ReLU
    h2 = bn_relu(conv_same(h1, w2_ref, K2, left2), g2_ref, be2_ref)      # (N*L, C2_pad)

    if sum_with_input:
        h2 = h2 + x                       # residual; pad lanes are 0 + 0

    out_ref[...] = h2.astype(out_ref.dtype)


def res_module_forward(x_ncl, w1, b1, g1, be1, w2, b2, g2, be2, *,
                       sum_with_input=True, matmul_dtype=jnp.bfloat16, lane=128):
    """x_ncl: (N, Cin, L) float32 (PyTorch layout). Weights in PyTorch layout:
       w1: (C1, Cin, K1), b1/g1/be1: (C1,), w2: (C2, C1, K2), b2/g2/be2: (C2,).
       Conv biases b1/b2 are accepted but mathematically cancelled by batch-stat BN,
       so they are not passed into the kernel."""
    del b1, b2  # cancelled by training-mode BatchNorm (batch-mean subtraction)

    N, Cin, L = x_ncl.shape
    C1, _, K1 = w1.shape
    C2, _, K2 = w2.shape
    left1, left2 = (K1 - 1) // 2, (K2 - 1) // 2
    if sum_with_input:
        assert Cin == C2, "residual add requires in_channels == conv2_filters"

    pad_to = lambda c: ((c + lane - 1) // lane) * lane
    Cip, C1p, C2p = pad_to(Cin), pad_to(C1), pad_to(C2)
    if sum_with_input:
        assert Cip == C2p

    # ---- layout glue (plain JAX): NCL -> channels-last slab, lane-dense (128-mult) channels.
    # TODO(synk): fold these transposes / pads into the kernel (einshape + in-kernel packing).
    x2d = jnp.transpose(x_ncl, (0, 2, 1)).reshape(N * L, Cin)
    x2d = jnp.pad(x2d, ((0, 0), (0, Cip - Cin)))                        # (N*L, Cip)

    # conv weights OIK -> (K, Cin_pad, Cout_pad), zero pad rows/cols, cast to MXU operand dtype
    w1t = jnp.pad(jnp.transpose(w1, (2, 1, 0)),
                  ((0, 0), (0, Cip - Cin), (0, C1p - C1))).astype(matmul_dtype)
    w2t = jnp.pad(jnp.transpose(w2, (2, 1, 0)),
                  ((0, 0), (0, C1p - C1), (0, C2p - C2))).astype(matmul_dtype)

    # BN affine params; pad lanes use (gamma=1, beta=0) so they map 0 -> 0.
    g1p = jnp.pad(g1, (0, C1p - C1), constant_values=1.0).reshape(1, C1p)
    be1p = jnp.pad(be1, (0, C1p - C1)).reshape(1, C1p)
    g2p = jnp.pad(g2, (0, C2p - C2), constant_values=1.0).reshape(1, C2p)
    be2p = jnp.pad(be2, (0, C2p - C2)).reshape(1, C2p)

    kernel = functools.partial(
        res_module_kernel, N=N, L=L, K1=K1, K2=K2, left1=left1, left2=left2,
        sum_with_input=sum_with_input, matmul_dtype=matmul_dtype)

    # Explicit VMEM limit from the actual resident buffers (+ output) with headroom.
    nbytes = lambda a: int(a.size) * jnp.dtype(a.dtype).itemsize
    resident = sum(map(nbytes, (x2d, w1t, w2t, g1p, be1p, g2p, be2p))) + N * L * C2p * 4
    vmem_limit = int(min(max(2 * resident + (8 << 20), 16 << 20), 96 << 20))

    vmem = pl.BlockSpec(memory_space=pltpu.MemorySpace.VMEM)
    out2d = pl.pallas_call(
        kernel,
        out_shape=jax.ShapeDtypeStruct((N * L, C2p), x_ncl.dtype),
        in_specs=[vmem] * 7,
        out_specs=vmem,
        compiler_params=pltpu.CompilerParams(vmem_limit_bytes=vmem_limit),
    )(x2d, w1t, w2t, g1p, be1p, g2p, be2p)

    # Drop pad lanes and restore PyTorch (N, C, L) layout.
    out = out2d[:, :C2].reshape(N, L, C2)
    return jnp.transpose(out, (0, 2, 1))


def reference_forward(x, w1, b1, g1, be1, w2, b2, g2, be2, *, sum_with_input=True):
    """Pure-JAX reference (NCL layout, lax conv, conv bias included), mirrors PyTorch forward."""
    def conv(a, w, b):
        K = w.shape[-1]
        left = (K - 1) // 2
        y = jax.lax.conv_general_dilated(
            a, w, window_strides=(1,), padding=[(left, (K - 1) - left)],
            dimension_numbers=('NCH', 'OIH', 'NCH'))
        return y + b[None, :, None]

    def bn(a, g, be):
        mean = jnp.mean(a, axis=(0, 2), keepdims=True)
        var = jnp.mean((a - mean) ** 2, axis=(0, 2), keepdims=True)
        return (a - mean) / jnp.sqrt(var + EPS) * g[None, :, None] + be[None, :, None]

    out = jnp.maximum(bn(conv(x, w1, b1), g1, be1), 0.0)
    out = jnp.maximum(bn(conv(out, w2, b2), g2, be2), 0.0)
    if sum_with_input:
        out = out + x
    return out


if __name__ == "__main__":
    # ResModule(in_channels=32, conv1_filters=64, conv2_filters=32,
    #           conv1_size=5, conv2_size=5, sum_with_input=True)
    N, Cin, L = 2, 32, 64
    C1, C2 = 64, 32
    K1, K2 = 5, 5

    key = jax.random.PRNGKey(0)
    ks = jax.random.split(key, 9)
    x = jax.random.normal(ks[0], (N, Cin, L), dtype=jnp.float32)
    w1 = 0.1 * jax.random.normal(ks[1], (C1, Cin, K1), dtype=jnp.float32)
    b1 = 0.1 * jax.random.normal(ks[2], (C1,), dtype=jnp.float32)
    g1 = 1.0 + 0.1 * jax.random.normal(ks[3], (C1,), dtype=jnp.float32)
    be1 = 0.1 * jax.random.normal(ks[4], (C1,), dtype=jnp.float32)
    w2 = 0.1 * jax.random.normal(ks[5], (C2, C1, K2), dtype=jnp.float32)
    b2 = 0.1 * jax.random.normal(ks[6], (C2,), dtype=jnp.float32)
    g2 = 1.0 + 0.1 * jax.random.normal(ks[7], (C2,), dtype=jnp.float32)
    be2 = 0.1 * jax.random.normal(ks[8], (C2,), dtype=jnp.float32)

    ref = jax.block_until_ready(
        reference_forward(x, w1, b1, g1, be1, w2, b2, g2, be2, sum_with_input=True))

    # Strict numerics check with f32 MXU operands.
    out_f32 = jax.block_until_ready(
        res_module_forward(x, w1, b1, g1, be1, w2, b2, g2, be2,
                           sum_with_input=True, matmul_dtype=jnp.float32))
    assert out_f32.shape == (N, Cin, L) and out_f32.dtype == jnp.float32
    assert jnp.allclose(out_f32, ref, rtol=1e-4, atol=1e-4), (
        f"f32 max abs err {jnp.max(jnp.abs(out_f32 - ref))}")

    # Default fast path: bf16 MXU operands, f32 accumulation (looser tolerance).
    out_bf16 = jax.block_until_ready(
        res_module_forward(x, w1, b1, g1, be1, w2, b2, g2, be2, sum_with_input=True))
    assert out_bf16.shape == (N, Cin, L) and out_bf16.dtype == jnp.float32
    assert jnp.allclose(out_bf16, ref, rtol=5e-2, atol=1e-1), (
        f"bf16 max abs err {jnp.max(jnp.abs(out_bf16 - ref))}")

    print("KERNEL_OK")
</pallas_src>

<mosaic_0001>
module attributes {stable_mosaic.version = 11 : i64} {
  func.func @res_module_kernel(%arg0: memref<128x128xf32, #tpu.memory_space<vmem>>, %arg1: memref<5x128x128xf32, #tpu.memory_space<vmem>>, %arg2: memref<5x128x128xf32, #tpu.memory_space<vmem>>, %arg3: memref<1x128xf32, #tpu.memory_space<vmem>>, %arg4: memref<1x128xf32, #tpu.memory_space<vmem>>, %arg5: memref<1x128xf32, #tpu.memory_space<vmem>>, %arg6: memref<1x128xf32, #tpu.memory_space<vmem>>, %arg7: memref<128x128xf32, #tpu.memory_space<vmem>>) attributes {dimension_semantics = [], scalar_prefetch = 0 : i64, scratch_operands = 0 : i64, tpu.core_type = #tpu.core_type<tc>} {
    %c0 = arith.constant 0 : index
    %c0_0 = arith.constant 0 : index
    %0 = vector.load %arg0[%c0, %c0_0] : memref<128x128xf32, #tpu.memory_space<vmem>>, vector<128x128xf32>
    %1 = tpu.iota {dimensions = array<i32: 0>} : vector<128x1xi32>
    %c64_i32 = arith.constant 64 : i32
    %2 = vector.broadcast %c64_i32 : i32 to vector<128x1xi32>
    %3 = arith.remsi %1, %2 : vector<128x1xi32>
    %cst = arith.constant 0.000000e+00 : f32
    %4 = vector.broadcast %cst : f32 to vector<128x128xf32>
    %c2_i32 = arith.constant 2 : i32
    %5 = tpu.dynamic_rotate %0 by %c2_i32 dim 0 : vector<128x128xf32>, i32 -> vector<128x128xf32>
    %c-2_i32 = arith.constant -2 : i32
    %6 = vector.broadcast %c-2_i32 : i32 to vector<128x1xi32>
    %7 = arith.addi %3, %6 : vector<128x1xi32>
    %c0_i32 = arith.constant 0 : i32
    %8 = vector.broadcast %c0_i32 : i32 to vector<128x1xi32>
    %9 = arith.cmpi sge, %7, %8 : vector<128x1xi32>
    %c-2_i32_1 = arith.constant -2 : i32
    %10 = vector.broadcast %c-2_i32_1 : i32 to vector<128x1xi32>
    %11 = arith.addi %3, %10 : vector<128x1xi32>
    %c64_i32_2 = arith.constant 64 : i32
    %12 = vector.broadcast %c64_i32_2 : i32 to vector<128x1xi32>
    %13 = arith.cmpi slt, %11, %12 : vector<128x1xi32>
    %14 = arith.andi %9, %13 : vector<128x1xi1>
    %cst_3 = arith.constant 0.000000e+00 : f32
    %15 = vector.shape_cast %14 : vector<128x1xi1> to vector<128x1xi1>
    %16 = vector.broadcast %15 : vector<128x1xi1> to vector<128x128xi1>
    %17 = vector.broadcast %cst_3 : f32 to vector<128x128xf32>
    %18 = arith.select %16, %5, %17 : vector<128x128xi1>, vector<128x128xf32>
    %c0_4 = arith.constant 0 : index
    %c0_5 = arith.constant 0 : index
    %c0_6 = arith.constant 0 : index
    %19 = vector.load %arg1[%c0_4, %c0_5, %c0_6] : memref<5x128x128xf32, #tpu.memory_space<vmem>>, vector<1x128x128xf32>
    %20 = vector.shape_cast %19 : vector<1x128x128xf32> to vector<128x128xf32>
    %cst_7 = arith.constant dense<0.000000e+00> : vector<128x128xf32>
    %21 = tpu.matmul %18, %20, %cst_7 {dimension_numbers = #tpu.dot_dimension_numbers<[1], [0], [0], [1], [0, 0, 1, 1], [], []>} : vector<128x128xf32>, vector<128x128xf32>, vector<128x128xf32> -> vector<128x128xf32>
    %22 = arith.addf %4, %21 : vector<128x128xf32>
    %c1_i32 = arith.constant 1 : i32
    %23 = tpu.dynamic_rotate %0 by %c1_i32 dim 0 : vector<128x128xf32>, i32 -> vector<128x128xf32>
    %c-1_i32 = arith.constant -1 : i32
    %24 = vector.broadcast %c-1_i32 : i32 to vector<128x1xi32>
    %25 = arith.addi %3, %24 : vector<128x1xi32>
    %c0_i32_8 = arith.constant 0 : i32
    %26 = vector.broadcast %c0_i32_8 : i32 to vector<128x1xi32>
    %27 = arith.cmpi sge, %25, %26 : vector<128x1xi32>
    %c-1_i32_9 = arith.constant -1 : i32
    %28 = vector.broadcast %c-1_i32_9 : i32 to vector<128x1xi32>
    %29 = arith.addi %3, %28 : vector<128x1xi32>
    %c64_i32_10 = arith.constant 64 : i32
    %30 = vector.broadcast %c64_i32_10 : i32 to vector<128x1xi32>
    %31 = arith.cmpi slt, %29, %30 : vector<128x1xi32>
    %32 = arith.andi %27, %31 : vector<128x1xi1>
    %cst_11 = arith.constant 0.000000e+00 : f32
    %33 = vector.shape_cast %32 : vector<128x1xi1> to vector<128x1xi1>
    %34 = vector.broadcast %33 : vector<128x1xi1> to vector<128x128xi1>
    %35 = vector.broadcast %cst_11 : f32 to vector<128x128xf32>
    %36 = arith.select %34, %23, %35 : vector<128x128xi1>, vector<128x128xf32>
    %c1 = arith.constant 1 : index
    %c0_12 = arith.constant 0 : index
    %c0_13 = arith.constant 0 : index
    %37 = vector.load %arg1[%c1, %c0_12, %c0_13] : memref<5x128x128xf32, #tpu.memory_space<vmem>>, vector<1x128x128xf32>
    %38 = vector.shape_cast %37 : vector<1x128x128xf32> to vector<128x128xf32>
    %cst_14 = arith.constant dense<0.000000e+00> : vector<128x128xf32>
    %39 = tpu.matmul %36, %38, %cst_14 {dimension_numbers = #tpu.dot_dimension_numbers<[1], [0], [0], [1], [0, 0, 1, 1], [], []>} : vector<128x128xf32>, vector<128x128xf32>, vector<128x128xf32> -> vector<128x128xf32>
    %40 = arith.addf %22, %39 : vector<128x128xf32>
    %c2 = arith.constant 2 : index
    %c0_15 = arith.constant 0 : index
    %c0_16 = arith.constant 0 : index
    %41 = vector.load %arg1[%c2, %c0_15, %c0_16] : memref<5x128x128xf32, #tpu.memory_space<vmem>>, vector<1x128x128xf32>
    %42 = vector.shape_cast %41 : vector<1x128x128xf32> to vector<128x128xf32>
    %cst_17 = arith.constant dense<0.000000e+00> : vector<128x128xf32>
    %43 = tpu.matmul %0, %42, %cst_17 {dimension_numbers = #tpu.dot_dimension_numbers<[1], [0], [0], [1], [0, 0, 1, 1], [], []>} : vector<128x128xf32>, vector<128x128xf32>, vector<128x128xf32> -> vector<128x128xf32>
    %44 = arith.addf %40, %43 : vector<128x128xf32>
    %c127_i32 = arith.constant 127 : i32
    %45 = tpu.dynamic_rotate %0 by %c127_i32 dim 0 : vector<128x128xf32>, i32 -> vector<128x128xf32>
    %c1_i32_18 = arith.constant 1 : i32
    %46 = vector.broadcast %c1_i32_18 : i32 to vector<128x1xi32>
    %47 = arith.addi %3, %46 : vector<128x1xi32>
    %c0_i32_19 = arith.constant 0 : i32
    %48 = vector.broadcast %c0_i32_19 : i32 to vector<128x1xi32>
    %49 = arith.cmpi sge, %47, %48 : vector<128x1xi32>
    %c1_i32_20 = arith.constant 1 : i32
    %50 = vector.broadcast %c1_i32_20 : i32 to vector<128x1xi32>
    %51 = arith.addi %3, %50 : vector<128x1xi32>
    %c64_i32_21 = arith.constant 64 : i32
    %52 = vector.broadcast %c64_i32_21 : i32 to vector<128x1xi32>
    %53 = arith.cmpi slt, %51, %52 : vector<128x1xi32>
    %54 = arith.andi %49, %53 : vector<128x1xi1>
    %cst_22 = arith.constant 0.000000e+00 : f32
    %55 = vector.shape_cast %54 : vector<128x1xi1> to vector<128x1xi1>
    %56 = vector.broadcast %55 : vector<128x1xi1> to vector<128x128xi1>
    %57 = vector.broadcast %cst_22 : f32 to vector<128x128xf32>
    %58 = arith.select %56, %45, %57 : vector<128x128xi1>, vector<128x128xf32>
    %c3 = arith.constant 3 : index
    %c0_23 = arith.constant 0 : index
    %c0_24 = arith.constant 0 : index
    %59 = vector.load %arg1[%c3, %c0_23, %c0_24] : memref<5x128x128xf32, #tpu.memory_space<vmem>>, vector<1x128x128xf32>
    %60 = vector.shape_cast %59 : vector<1x128x128xf32> to vector<128x128xf32>
    %cst_25 = arith.constant dense<0.000000e+00> : vector<128x128xf32>
    %61 = tpu.matmul %58, %60, %cst_25 {dimension_numbers = #tpu.dot_dimension_numbers<[1], [0], [0], [1], [0, 0, 1, 1], [], []>} : vector<128x128xf32>, vector<128x128xf32>, vector<128x128xf32> -> vector<128x128xf32>
    %62 = arith.addf %44, %61 : vector<128x128xf32>
    %c126_i32 = arith.constant 126 : i32
    %63 = tpu.dynamic_rotate %0 by %c126_i32 dim 0 : vector<128x128xf32>, i32 -> vector<128x128xf32>
    %c2_i32_26 = arith.constant 2 : i32
    %64 = vector.broadcast %c2_i32_26 : i32 to vector<128x1xi32>
    %65 = arith.addi %3, %64 : vector<128x1xi32>
    %c0_i32_27 = arith.constant 0 : i32
    %66 = vector.broadcast %c0_i32_27 : i32 to vector<128x1xi32>
    %67 = arith.cmpi sge, %65, %66 : vector<128x1xi32>
    %c2_i32_28 = arith.constant 2 : i32
    %68 = vector.broadcast %c2_i32_28 : i32 to vector<128x1xi32>
    %69 = arith.addi %3, %68 : vector<128x1xi32>
    %c64_i32_29 = arith.constant 64 : i32
    %70 = vector.broadcast %c64_i32_29 : i32 to vector<128x1xi32>
    %71 = arith.cmpi slt, %69, %70 : vector<128x1xi32>
    %72 = arith.andi %67, %71 : vector<128x1xi1>
    %cst_30 = arith.constant 0.000000e+00 : f32
    %73 = vector.shape_cast %72 : vector<128x1xi1> to vector<128x1xi1>
    %74 = vector.broadcast %73 : vector<128x1xi1> to vector<128x128xi1>
    %75 = vector.broadcast %cst_30 : f32 to vector<128x128xf32>
    %76 = arith.select %74, %63, %75 : vector<128x128xi1>, vector<128x128xf32>
    %c4 = arith.constant 4 : index
    %c0_31 = arith.constant 0 : index
    %c0_32 = arith.constant 0 : index
    %77 = vector.load %arg1[%c4, %c0_31, %c0_32] : memref<5x128x128xf32, #tpu.memory_space<vmem>>, vector<1x128x128xf32>
    %78 = vector.shape_cast %77 : vector<1x128x128xf32> to vector<128x128xf32>
    %cst_33 = arith.constant dense<0.000000e+00> : vector<128x128xf32>
    %79 = tpu.matmul %76, %78, %cst_33 {dimension_numbers = #tpu.dot_dimension_numbers<[1], [0], [0], [1], [0, 0, 1, 1], [], []>} : vector<128x128xf32>, vector<128x128xf32>, vector<128x128xf32> -> vector<128x128xf32>
    %80 = arith.addf %62, %79 : vector<128x128xf32>
    %cst_34 = arith.constant dense<0.000000e+00> : vector<128xf32>
    %81 = vector.multi_reduction <add>, %80, %cst_34 [0] : vector<128x128xf32> to vector<128xf32>
    %82 = vector.shape_cast %81 : vector<128xf32> to vector<1x128xf32>
    %cst_35 = arith.constant 7.812500e-03 : f32
    %83 = vector.broadcast %cst_35 : f32 to vector<1x128xf32>
    %84 = arith.mulf %82, %83 : vector<1x128xf32>
    %85 = vector.broadcast %84 : vector<1x128xf32> to vector<128x128xf32>
    %86 = arith.subf %80, %85 : vector<128x128xf32>
    %87 = arith.mulf %86, %86 : vector<128x128xf32>
    %cst_36 = arith.constant dense<0.000000e+00> : vector<128xf32>
    %88 = vector.multi_reduction <add>, %87, %cst_36 [0] : vector<128x128xf32> to vector<128xf32>
    %89 = vector.shape_cast %88 : vector<128xf32> to vector<1x128xf32>
    %cst_37 = arith.constant 7.812500e-03 : f32
    %90 = vector.broadcast %cst_37 : f32 to vector<1x128xf32>
    %91 = arith.mulf %89, %90 : vector<1x128xf32>
    %c0_38 = arith.constant 0 : index
    %c0_39 = arith.constant 0 : index
    %92 = vector.load %arg3[%c0_38, %c0_39] : memref<1x128xf32, #tpu.memory_space<vmem>>, vector<1x128xf32>
    %cst_40 = arith.constant 9.99999974E-6 : f32
    %93 = vector.broadcast %cst_40 : f32 to vector<1x128xf32>
    %94 = arith.addf %91, %93 : vector<1x128xf32>
    %95 = math.rsqrt %94 : vector<1x128xf32>
    %96 = arith.mulf %92, %95 : vector<1x128xf32>
    %97 = vector.broadcast %96 : vector<1x128xf32> to vector<128x128xf32>
    %98 = arith.mulf %86, %97 : vector<128x128xf32>
    %c0_41 = arith.constant 0 : index
    %c0_42 = arith.constant 0 : index
    %99 = vector.load %arg4[%c0_41, %c0_42] : memref<1x128xf32, #tpu.memory_space<vmem>>, vector<1x128xf32>
    %100 = vector.broadcast %99 : vector<1x128xf32> to vector<128x128xf32>
    %101 = arith.addf %98, %100 : vector<128x128xf32>
    %cst_43 = arith.constant 0.000000e+00 : f32
    %102 = vector.broadcast %cst_43 : f32 to vector<128x128xf32>
    %103 = arith.maximumf %101, %102 : vector<128x128xf32>
    %cst_44 = arith.constant 0.000000e+00 : f32
    %104 = vector.broadcast %cst_44 : f32 to vector<128x128xf32>
    %c2_i32_45 = arith.constant 2 : i32
    %105 = tpu.dynamic_rotate %103 by %c2_i32_45 dim 0 : vector<128x128xf32>, i32 -> vector<128x128xf32>
    %c-2_i32_46 = arith.constant -2 : i32
    %106 = vector.broadcast %c-2_i32_46 : i32 to vector<128x1xi32>
    %107 = arith.addi %3, %106 : vector<128x1xi32>
    %c0_i32_47 = arith.constant 0 : i32
    %108 = vector.broadcast %c0_i32_47 : i32 to vector<128x1xi32>
    %109 = arith.cmpi sge, %107, %108 : vector<128x1xi32>
    %c-2_i32_48 = arith.constant -2 : i32
    %110 = vector.broadcast %c-2_i32_48 : i32 to vector<128x1xi32>
    %111 = arith.addi %3, %110 : vector<128x1xi32>
    %c64_i32_49 = arith.constant 64 : i32
    %112 = vector.broadcast %c64_i32_49 : i32 to vector<128x1xi32>
    %113 = arith.cmpi slt, %111, %112 : vector<128x1xi32>
    %114 = arith.andi %109, %113 : vector<128x1xi1>
    %cst_50 = arith.constant 0.000000e+00 : f32
    %115 = vector.shape_cast %114 : vector<128x1xi1> to vector<128x1xi1>
    %116 = vector.broadcast %115 : vector<128x1xi1> to vector<128x128xi1>
    %117 = vector.broadcast %cst_50 : f32 to vector<128x128xf32>
    %118 = arith.select %116, %105, %117 : vector<128x128xi1>, vector<128x128xf32>
    %c0_51 = arith.constant 0 : index
    %c0_52 = arith.constant 0 : index
    %c0_53 = arith.constant 0 : index
    %119 = vector.load %arg2[%c0_51, %c0_52, %c0_53] : memref<5x128x128xf32, #tpu.memory_space<vmem>>, vector<1x128x128xf32>
    %120 = vector.shape_cast %119 : vector<1x128x128xf32> to vector<128x128xf32>
    %cst_54 = arith.constant dense<0.000000e+00> : vector<128x128xf32>
    %121 = tpu.matmul %118, %120, %cst_54 {dimension_numbers = #tpu.dot_dimension_numbers<[1], [0], [0], [1], [0, 0, 1, 1], [], []>} : vector<128x128xf32>, vector<128x128xf32>, vector<128x128xf32> -> vector<128x128xf32>
    %122 = arith.addf %104, %121 : vector<128x128xf32>
    %c1_i32_55 = arith.constant 1 : i32
    %123 = tpu.dynamic_rotate %103 by %c1_i32_55 dim 0 : vector<128x128xf32>, i32 -> vector<128x128xf32>
    %c-1_i32_56 = arith.constant -1 : i32
    %124 = vector.broadcast %c-1_i32_56 : i32 to vector<128x1xi32>
    %125 = arith.addi %3, %124 : vector<128x1xi32>
    %c0_i32_57 = arith.constant 0 : i32
    %126 = vector.broadcast %c0_i32_57 : i32 to vector<128x1xi32>
    %127 = arith.cmpi sge, %125, %126 : vector<128x1xi32>
    %c-1_i32_58 = arith.constant -1 : i32
    %128 = vector.broadcast %c-1_i32_58 : i32 to vector<128x1xi32>
    %129 = arith.addi %3, %128 : vector<128x1xi32>
    %c64_i32_59 = arith.constant 64 : i32
    %130 = vector.broadcast %c64_i32_59 : i32 to vector<128x1xi32>
    %131 = arith.cmpi slt, %129, %130 : vector<128x1xi32>
    %132 = arith.andi %127, %131 : vector<128x1xi1>
    %cst_60 = arith.constant 0.000000e+00 : f32
    %133 = vector.shape_cast %132 : vector<128x1xi1> to vector<128x1xi1>
    %134 = vector.broadcast %133 : vector<128x1xi1> to vector<128x128xi1>
    %135 = vector.broadcast %cst_60 : f32 to vector<128x128xf32>
    %136 = arith.select %134, %123, %135 : vector<128x128xi1>, vector<128x128xf32>
    %c1_61 = arith.constant 1 : index
    %c0_62 = arith.constant 0 : index
    %c0_63 = arith.constant 0 : index
    %137 = vector.load %arg2[%c1_61, %c0_62, %c0_63] : memref<5x128x128xf32, #tpu.memory_space<vmem>>, vector<1x128x128xf32>
    %138 = vector.shape_cast %137 : vector<1x128x128xf32> to vector<128x128xf32>
    %cst_64 = arith.constant dense<0.000000e+00> : vector<128x128xf32>
    %139 = tpu.matmul %136, %138, %cst_64 {dimension_numbers = #tpu.dot_dimension_numbers<[1], [0], [0], [1], [0, 0, 1, 1], [], []>} : vector<128x128xf32>, vector<128x128xf32>, vector<128x128xf32> -> vector<128x128xf32>
    %140 = arith.addf %122, %139 : vector<128x128xf32>
    %c2_65 = arith.constant 2 : index
    %c0_66 = arith.constant 0 : index
    %c0_67 = arith.constant 0 : index
    %141 = vector.load %arg2[%c2_65, %c0_66, %c0_67] : memref<5x128x128xf32, #tpu.memory_space<vmem>>, vector<1x128x128xf32>
    %142 = vector.shape_cast %141 : vector<1x128x128xf32> to vector<128x128xf32>
    %cst_68 = arith.constant dense<0.000000e+00> : vector<128x128xf32>
    %143 = tpu.matmul %103, %142, %cst_68 {dimension_numbers = #tpu.dot_dimension_numbers<[1], [0], [0], [1], [0, 0, 1, 1], [], []>} : vector<128x128xf32>, vector<128x128xf32>, vector<128x128xf32> -> vector<128x128xf32>
    %144 = arith.addf %140, %143 : vector<128x128xf32>
    %c127_i32_69 = arith.constant 127 : i32
    %145 = tpu.dynamic_rotate %103 by %c127_i32_69 dim 0 : vector<128x128xf32>, i32 -> vector<128x128xf32>
    %c1_i32_70 = arith.constant 1 : i32
    %146 = vector.broadcast %c1_i32_70 : i32 to vector<128x1xi32>
    %147 = arith.addi %3, %146 : vector<128x1xi32>
    %c0_i32_71 = arith.constant 0 : i32
    %148 = vector.broadcast %c0_i32_71 : i32 to vector<128x1xi32>
    %149 = arith.cmpi sge, %147, %148 : vector<128x1xi32>
    %c1_i32_72 = arith.constant 1 : i32
    %150 = vector.broadcast %c1_i32_72 : i32 to vector<128x1xi32>
    %151 = arith.addi %3, %150 : vector<128x1xi32>
    %c64_i32_73 = arith.constant 64 : i32
    %152 = vector.broadcast %c64_i32_73 : i32 to vector<128x1xi32>
    %153 = arith.cmpi slt, %151, %152 : vector<128x1xi32>
    %154 = arith.andi %149, %153 : vector<128x1xi1>
    %cst_74 = arith.constant 0.000000e+00 : f32
    %155 = vector.shape_cast %154 : vector<128x1xi1> to vector<128x1xi1>
    %156 = vector.broadcast %155 : vector<128x1xi1> to vector<128x128xi1>
    %157 = vector.broadcast %cst_74 : f32 to vector<128x128xf32>
    %158 = arith.select %156, %145, %157 : vector<128x128xi1>, vector<128x128xf32>
    %c3_75 = arith.constant 3 : index
    %c0_76 = arith.constant 0 : index
    %c0_77 = arith.constant 0 : index
    %159 = vector.load %arg2[%c3_75, %c0_76, %c0_77] : memref<5x128x128xf32, #tpu.memory_space<vmem>>, vector<1x128x128xf32>
    %160 = vector.shape_cast %159 : vector<1x128x128xf32> to vector<128x128xf32>
    %cst_78 = arith.constant dense<0.000000e+00> : vector<128x128xf32>
    %161 = tpu.matmul %158, %160, %cst_78 {dimension_numbers = #tpu.dot_dimension_numbers<[1], [0], [0], [1], [0, 0, 1, 1], [], []>} : vector<128x128xf32>, vector<128x128xf32>, vector<128x128xf32> -> vector<128x128xf32>
    %162 = arith.addf %144, %161 : vector<128x128xf32>
    %c126_i32_79 = arith.constant 126 : i32
    %163 = tpu.dynamic_rotate %103 by %c126_i32_79 dim 0 : vector<128x128xf32>, i32 -> vector<128x128xf32>
    %c2_i32_80 = arith.constant 2 : i32
    %164 = vector.broadcast %c2_i32_80 : i32 to vector<128x1xi32>
    %165 = arith.addi %3, %164 : vector<128x1xi32>
    %c0_i32_81 = arith.constant 0 : i32
    %166 = vector.broadcast %c0_i32_81 : i32 to vector<128x1xi32>
    %167 = arith.cmpi sge, %165, %166 : vector<128x1xi32>
    %c2_i32_82 = arith.constant 2 : i32
    %168 = vector.broadcast %c2_i32_82 : i32 to vector<128x1xi32>
    %169 = arith.addi %3, %168 : vector<128x1xi32>
    %c64_i32_83 = arith.constant 64 : i32
    %170 = vector.broadcast %c64_i32_83 : i32 to vector<128x1xi32>
    %171 = arith.cmpi slt, %169, %170 : vector<128x1xi32>
    %172 = arith.andi %167, %171 : vector<128x1xi1>
    %cst_84 = arith.constant 0.000000e+00 : f32
    %173 = vector.shape_cast %172 : vector<128x1xi1> to vector<128x1xi1>
    %174 = vector.broadcast %173 : vector<128x1xi1> to vector<128x128xi1>
    %175 = vector.broadcast %cst_84 : f32 to vector<128x128xf32>
    %176 = arith.select %174, %163, %175 : vector<128x128xi1>, vector<128x128xf32>
    %c4_85 = arith.constant 4 : index
    %c0_86 = arith.constant 0 : index
    %c0_87 = arith.constant 0 : index
    %177 = vector.load %arg2[%c4_85, %c0_86, %c0_87] : memref<5x128x128xf32, #tpu.memory_space<vmem>>, vector<1x128x128xf32>
    %178 = vector.shape_cast %177 : vector<1x128x128xf32> to vector<128x128xf32>
    %cst_88 = arith.constant dense<0.000000e+00> : vector<128x128xf32>
    %179 = tpu.matmul %176, %178, %cst_88 {dimension_numbers = #tpu.dot_dimension_numbers<[1], [0], [0], [1], [0, 0, 1, 1], [], []>} : vector<128x128xf32>, vector<128x128xf32>, vector<128x128xf32> -> vector<128x128xf32>
    %180 = arith.addf %162, %179 : vector<128x128xf32>
    %cst_89 = arith.constant dense<0.000000e+00> : vector<128xf32>
    %181 = vector.multi_reduction <add>, %180, %cst_89 [0] : vector<128x128xf32> to vector<128xf32>
    %182 = vector.shape_cast %181 : vector<128xf32> to vector<1x128xf32>
    %cst_90 = arith.constant 7.812500e-03 : f32
    %183 = vector.broadcast %cst_90 : f32 to vector<1x128xf32>
    %184 = arith.mulf %182, %183 : vector<1x128xf32>
    %185 = vector.broadcast %184 : vector<1x128xf32> to vector<128x128xf32>
    %186 = arith.subf %180, %185 : vector<128x128xf32>
    %187 = arith.mulf %186, %186 : vector<128x128xf32>
    %cst_91 = arith.constant dense<0.000000e+00> : vector<128xf32>
    %188 = vector.multi_reduction <add>, %187, %cst_91 [0] : vector<128x128xf32> to vector<128xf32>
    %189 = vector.shape_cast %188 : vector<128xf32> to vector<1x128xf32>
    %cst_92 = arith.constant 7.812500e-03 : f32
    %190 = vector.broadcast %cst_92 : f32 to vector<1x128xf32>
    %191 = arith.mulf %189, %190 : vector<1x128xf32>
    %c0_93 = arith.constant 0 : index
    %c0_94 = arith.constant 0 : index
    %192 = vector.load %arg5[%c0_93, %c0_94] : memref<1x128xf32, #tpu.memory_space<vmem>>, vector<1x128xf32>
    %cst_95 = arith.constant 9.99999974E-6 : f32
    %193 = vector.broadcast %cst_95 : f32 to vector<1x128xf32>
    %194 = arith.addf %191, %193 : vector<1x128xf32>
    %195 = math.rsqrt %194 : vector<1x128xf32>
    %196 = arith.mulf %192, %195 : vector<1x128xf32>
    %197 = vector.broadcast %196 : vector<1x128xf32> to vector<128x128xf32>
    %198 = arith.mulf %186, %197 : vector<128x128xf32>
    %c0_96 = arith.constant 0 : index
    %c0_97 = arith.constant 0 : index
    %199 = vector.load %arg6[%c0_96, %c0_97] : memref<1x128xf32, #tpu.memory_space<vmem>>, vector<1x128xf32>
    %200 = vector.broadcast %199 : vector<1x128xf32> to vector<128x128xf32>
    %201 = arith.addf %198, %200 : vector<128x128xf32>
    %cst_98 = arith.constant 0.000000e+00 : f32
    %202 = vector.broadcast %cst_98 : f32 to vector<128x128xf32>
    %203 = arith.maximumf %201, %202 : vector<128x128xf32>
    %204 = arith.addf %203, %0 : vector<128x128xf32>
    %c0_99 = arith.constant 0 : index
    %c0_100 = arith.constant 0 : index
    %205 = vector.load %arg7[%c0_99, %c0_100] : memref<128x128xf32, #tpu.memory_space<vmem>>, vector<128x128xf32>
    tpu.vector_store %arg7[%c0_99, %c0_100], %204 {strides = array<i32>} : memref<128x128xf32, #tpu.memory_space<vmem>>, vector<128x128xf32>,
    return
  }
}

</mosaic_0001>

<llo_original>
// kernel: tpu_custom_call.1
$region0: #{tpu_custom_call.1}
  #allocation0 [shape = 'u32[]', space=smem, size = 0x4, offset = 0x4, fixed_abs, tag = 'smem constant byte address 0x4 - core index']
  #allocation1 [shape = 'u32[72,128]{1,0:T(1,128)}', space=vmem, size = 0x9000, scoped, tag = 'internal scratch']
  %s0 = inlined_call_operand.hbm [shape: f32[128,128], index: 0, kind: input, shape index: {}]
  %s1 = inlined_call_operand.hbm [shape: f32[5,128,128], index: 1, kind: input, shape index: {}]
  %s2 = inlined_call_operand.hbm [shape: f32[5,128,128], index: 2, kind: input, shape index: {}]
  %s3 = inlined_call_operand.vmem [shape: f32[1,128], index: 3, kind: input, shape index: {}]
  %s4 = inlined_call_operand.vmem [shape: f32[1,128], index: 4, kind: input, shape index: {}]
  %s5 = inlined_call_operand.vmem [shape: f32[1,128], index: 5, kind: input, shape index: {}]
  %s6 = inlined_call_operand.vmem [shape: f32[1,128], index: 6, kind: input, shape index: {}]
  %s7 = inlined_call_operand.hbm [shape: f32[128,128], index: 7, kind: output, shape index: {}]
  %s8 = sld [smem:[#allocation0]]
  $region50: #{tpu_custom_call.1} parent=0
    _
  %s10 = ssub.s32 1, %s8
  %s11 = scalar_select 0, %s10, %s8
  $region1: #{tpu_custom_call.1} parent=0
    #allocation2 [shape = 'u8[65536]{0}', space=vmem, size = 0x10000, scoped, tag = 'input window, operand 0, single buffered']
    #allocation3 [shape = 's32[1]{0}', space=sflag, size = 0x4, scoped, tag = 'scoped memory for tpu_custom_call.1']
    #allocation4 [shape = 's32[1]{0}', space=sflag, size = 0x4, scoped, tag = 'scoped memory for tpu_custom_call.1']
    #allocation5 [shape = 'u8[327680]{0}', space=vmem, size = 0x50000, scoped, tag = 'input window, operand 1, single buffered']
    #allocation6 [shape = 's32[1]{0}', space=sflag, size = 0x4, scoped, tag = 'scoped memory for tpu_custom_call.1']
    #allocation7 [shape = 'u8[327680]{0}', space=vmem, size = 0x50000, scoped, tag = 'input window, operand 2, single buffered']
    #allocation8 [shape = 'u8[65536]{0}', space=vmem, size = 0x10000, scoped, tag = 'output window, operand 0, single buffered']
    %12 = vsyncpa [#allocation3], 0
    %13 = vsyncpa [#allocation6], 0
    %14 = vsyncpa [#allocation4], 0
    // Predicated region
    $region2: #{tpu_custom_call.1} parent=1 // pred_check
      _
    $region3: #{tpu_custom_call.1} parent=1 // pred_check_branch
      %16 = sbr.rel (0) target = $region5
    $region4: #{tpu_custom_call.1} parent=1 // pred_region
      %18 = vsyncadd [#allocation3], 0
      %s19 = sshll.u32 %s0, 4
      %s20 = int_to_ptr.hbm [resolvable:$true] %s19
      %s21 = sshll.u32 [#allocation2], 4
      %s22 = int_to_ptr.vmem [resolvable:$true] %s21
      %27 = dma.hbm_to_vmem [thread:$0]  %s20, 2048, %s22, [#allocation3], 128, 128, 8
    $region5: #{tpu_custom_call.1} parent=1 // pred_fallthru
      _
    // Predicated region
    $region6: #{tpu_custom_call.1} parent=1 // pred_check
      _
    $region7: #{tpu_custom_call.1} parent=1 // pred_check_branch
      %29 = sbr.rel (0) target = $region9
    $region8: #{tpu_custom_call.1} parent=1 // pred_region
      %31 = vsyncadd [#allocation6], 0
      %s32 = sshll.u32 %s1, 4
      %s33 = int_to_ptr.hbm [resolvable:$true] %s32
      %s34 = sshll.u32 [#allocation5], 4
      %s35 = int_to_ptr.vmem [resolvable:$true] %s34
      %40 = dma.hbm_to_vmem [thread:$0]  %s33, 10240, %s35, [#allocation6], 128, 128, 8
    $region9: #{tpu_custom_call.1} parent=1 // pred_fallthru
      _
    // Predicated region
    $region10: #{tpu_custom_call.1} parent=1 // pred_check
      _
    $region11: #{tpu_custom_call.1} parent=1 // pred_check_branch
      %42 = sbr.rel (0) target = $region13
    $region12: #{tpu_custom_call.1} parent=1 // pred_region
      %44 = vsyncadd [#allocation6], 0
      %s45 = sshll.u32 %s2, 4
      %s46 = int_to_ptr.hbm [resolvable:$true] %s45
      %s47 = sshll.u32 [#allocation7], 4
      %s48 = int_to_ptr.vmem [resolvable:$true] %s47
      %53 = dma.hbm_to_vmem [thread:$0]  %s46, 10240, %s48, [#allocation6], 128, 128, 8
    $region13: #{tpu_custom_call.1} parent=1 // pred_fallthru
      _
    // Predicated region
    $region14: #{tpu_custom_call.1} parent=1 // pred_check
      _
    $region15: #{tpu_custom_call.1} parent=1 // pred_check_branch
      %55 = sbr.rel (0) target = $region17
    $region16: #{tpu_custom_call.1} parent=1 // pred_region
      _
    $region17: #{tpu_custom_call.1} parent=1 // pred_fallthru
      _
    // Predicated region
    $region18: #{tpu_custom_call.1} parent=1 // pred_check
      _
    $region19: #{tpu_custom_call.1} parent=1 // pred_check_branch
      %57 = sbr.rel (0) target = $region21
    $region20: #{tpu_custom_call.1} parent=1 // pred_region
      _
    $region21: #{tpu_custom_call.1} parent=1 // pred_fallthru
      _
    // Predicated region
    $region22: #{tpu_custom_call.1} parent=1 // pred_check
      _
    $region23: #{tpu_custom_call.1} parent=1 // pred_check_branch
      %59 = sbr.rel (0) target = $region25
    $region24: #{tpu_custom_call.1} parent=1 // pred_region
      _
    $region25: #{tpu_custom_call.1} parent=1 // pred_fallthru
      _
    // Predicated region
    $region26: #{tpu_custom_call.1} parent=1 // pred_check
      _
    $region27: #{tpu_custom_call.1} parent=1 // pred_check_branch
      %61 = sbr.rel (0) target = $region29
    $region28: #{tpu_custom_call.1} parent=1 // pred_region
      _
    $region29: #{tpu_custom_call.1} parent=1 // pred_fallthru
      _
    // Predicated region
    $region30: #{tpu_custom_call.1} parent=1 // pred_check
      _
    $region31: #{tpu_custom_call.1} parent=1 // pred_check_branch
      %63 = sbr.rel (0) target = $region33
    $region32: #{tpu_custom_call.1} parent=1 // pred_region
      %65 = dma.done [#allocation3], 2048
    $region33: #{tpu_custom_call.1} parent=1 // pred_fallthru
      _
    // Predicated region
    $region34: #{tpu_custom_call.1} parent=1 // pred_check
      _
    $region35: #{tpu_custom_call.1} parent=1 // pred_check_branch
      %67 = sbr.rel (0) target = $region37
    $region36: #{tpu_custom_call.1} parent=1 // pred_region
      %69 = dma.done [#allocation6], 10240
    $region37: #{tpu_custom_call.1} parent=1 // pred_fallthru
      _
    // Predicated region
    $region38: #{tpu_custom_call.1} parent=1 // pred_check
      _
    $region39: #{tpu_custom_call.1} parent=1 // pred_check_branch
      %71 = sbr.rel (0) target = $region41
    $region40: #{tpu_custom_call.1} parent=1 // pred_region
      %73 = dma.done [#allocation6], 10240
    $region41: #{tpu_custom_call.1} parent=1 // pred_fallthru
      _
    %v74 = vld [vmem:[#allocation2] sm:$0xff]
    %v75 = vld [vmem:[#allocation2 + $0x8] sm:$0xff]
    %v76 = vld [vmem:[#allocation2 + $0x10] sm:$0xff]
    %v77 = vld [vmem:[#allocation2 + $0x18] sm:$0xff]
    %v78 = vld [vmem:[#allocation2 + $0x20] sm:$0xff]
    %v79 = vld [vmem:[#allocation2 + $0x28] sm:$0xff]
    %v80 = vld [vmem:[#allocation2 + $0x30] sm:$0xff]
    %v81 = vld [vmem:[#allocation2 + $0x38] sm:$0xff]
    %v82 = vld [vmem:[#allocation2 + $0x40] sm:$0xff]
    %v83 = vld [vmem:[#allocation2 + $0x48] sm:$0xff]
    %v84 = vld [vmem:[#allocation2 + $0x50] sm:$0xff]
    %v85 = vld [vmem:[#allocation2 + $0x58] sm:$0xff]
    %v86 = vld [vmem:[#allocation2 + $0x60] sm:$0xff]
    %v87 = vld [vmem:[#allocation2 + $0x68] sm:$0xff]
    %v88 = vld [vmem:[#allocation2 + $0x70] sm:$0xff]
    %v89 = vld [vmem:[#allocation2 + $0x78] sm:$0xff]
    %v90 = vlaneseq
    %v91 = vshrl.u32 %v90, 7
    %v92 = vadd.s32 %v91, 8
    %v93 = vadd.s32 %v91, 16
    %v94 = vadd.s32 %v91, 24
    %v95 = vadd.s32 %v91, 32
    %v96 = vadd.s32 %v91, 40
    %v97 = vadd.s32 %v91, 48
    %v98 = vadd.s32 %v91, 56
    %v99 = vadd.s32 %v91, 64
    %v100 = vadd.s32 %v91, 72
    %v101 = vadd.s32 %v91, 80
    %v102 = vadd.s32 %v91, 88
    %v103 = vadd.s32 %v91, 96
    %v104 = vadd.s32 %v91, 104
    %v105 = vadd.s32 %v91, 112
    %v106 = vadd.s32 %v91, 120
    %vm107 = vcmp.lt.s32.totalorder %v91, 0
    %v108 = vsub.s32 0, %v91
    %v109 = vsel %vm107, %v108, %v91
    %v110 = vshrl.u32 %v109, 6
    %v111 = vand.u32 %v109, 63
    %v112 = vsub.s32 0, %v111
    %v113 = vsel %vm107, %v112, %v111
    %vm114 = vcmp.lt.s32.totalorder %v92, 0
    %v115 = vsub.s32 0, %v92
    %v116 = vsel %vm114, %v115, %v92
    %v117 = vshrl.u32 %v116, 6
    %v118 = vand.u32 %v116, 63
    %v119 = vsub.s32 0, %v118
    %v120 = vsel %vm114, %v119, %v118
    %vm121 = vcmp.lt.s32.totalorder %v93, 0
    %v122 = vsub.s32 0, %v93
    %v123 = vsel %vm121, %v122, %v93
    %v124 = vshrl.u32 %v123, 6
    %v125 = vand.u32 %v123, 63
    %v126 = vsub.s32 0, %v125
    %v127 = vsel %vm121, %v126, %v125
    %vm128 = vcmp.lt.s32.totalorder %v94, 0
    %v129 = vsub.s32 0, %v94
    %v130 = vsel %vm128, %v129, %v94
    %v131 = vshrl.u32 %v130, 6
    %v132 = vand.u32 %v130, 63
    %v133 = vsub.s32 0, %v132
    %v134 = vsel %vm128, %v133, %v132
    %vm135 = vcmp.lt.s32.totalorder %v95, 0
    %v136 = vsub.s32 0, %v95
    %v137 = vsel %vm135, %v136, %v95
    %v138 = vshrl.u32 %v137, 6
    %v139 = vand.u32 %v137, 63
    %v140 = vsub.s32 0, %v139
    %v141 = vsel %vm135, %v140, %v139
    %vm142 = vcmp.lt.s32.totalorder %v96, 0
    %v143 = vsub.s32 0, %v96
    %v144 = vsel %vm142, %v143, %v96
    %v145 = vshrl.u32 %v144, 6
    %v146 = vand.u32 %v144, 63
    %v147 = vsub.s32 0, %v146
    %v148 = vsel %vm142, %v147, %v146
    %vm149 = vcmp.lt.s32.totalorder %v97, 0
    %v150 = vsub.s32 0, %v97
    %v151 = vsel %vm149, %v150, %v97
    %v152 = vshrl.u32 %v151, 6
    %v153 = vand.u32 %v151, 63
    %v154 = vsub.s32 0, %v153
    %v155 = vsel %vm149, %v154, %v153
    %vm156 = vcmp.lt.s32.totalorder %v98, 0
    %v157 = vsub.s32 0, %v98
    %v158 = vsel %vm156, %v157, %v98
    %v159 = vshrl.u32 %v158, 6
    %v160 = vand.u32 %v158, 63
    %v161 = vsub.s32 0, %v160
    %v162 = vsel %vm156, %v161, %v160
    %vm163 = vcmp.lt.s32.totalorder %v99, 0
    %v164 = vsub.s32 0, %v99
    %v165 = vsel %vm163, %v164, %v99
    %v166 = vshrl.u32 %v165, 6
    %v167 = vand.u32 %v165, 63
    %v168 = vsub.s32 0, %v167
    %v169 = vsel %vm163, %v168, %v167
    %vm170 = vcmp.lt.s32.totalorder %v100, 0
    %v171 = vsub.s32 0, %v100
    %v172 = vsel %vm170, %v171, %v100
    %v173 = vshrl.u32 %v172, 6
    %v174 = vand.u32 %v172, 63
    %v175 = vsub.s32 0, %v174
    %v176 = vsel %vm170, %v175, %v174
    %vm177 = vcmp.lt.s32.totalorder %v101, 0
    %v178 = vsub.s32 0, %v101
    %v179 = vsel %vm177, %v178, %v101
    %v180 = vshrl.u32 %v179, 6
    %v181 = vand.u32 %v179, 63
    %v182 = vsub.s32 0, %v181
    %v183 = vsel %vm177, %v182, %v181
    %vm184 = vcmp.lt.s32.totalorder %v102, 0
    %v185 = vsub.s32 0, %v102
    %v186 = vsel %vm184, %v185, %v102
    %v187 = vshrl.u32 %v186, 6
    %v188 = vand.u32 %v186, 63
    %v189 = vsub.s32 0, %v188
    %v190 = vsel %vm184, %v189, %v188
    %vm191 = vcmp.lt.s32.totalorder %v103, 0
    %v192 = vsub.s32 0, %v103
    %v193 = vsel %vm191, %v192, %v103
    %v194 = vshrl.u32 %v193, 6
    %v195 = vand.u32 %v193, 63
    %v196 = vsub.s32 0, %v195
    %v197 = vsel %vm191, %v196, %v195
    %vm198 = vcmp.lt.s32.totalorder %v104, 0
    %v199 = vsub.s32 0, %v104
    %v200 = vsel %vm198, %v199, %v104
    %v201 = vshrl.u32 %v200, 6
    %v202 = vand.u32 %v200, 63
    %v203 = vsub.s32 0, %v202
    %v204 = vsel %vm198, %v203, %v202
    %vm205 = vcmp.lt.s32.totalorder %v105, 0
    %v206 = vsub.s32 0, %v105
    %v207 = vsel %vm205, %v206, %v105
    %v208 = vshrl.u32 %v207, 6
    %v209 = vand.u32 %v207, 63
    %v210 = vsub.s32 0, %v209
    %v211 = vsel %vm205, %v210, %v209
    %vm212 = vcmp.lt.s32.totalorder %v106, 0
    %v213 = vsub.s32 0, %v106
    %v214 = vsel %vm212, %v213, %v106
    %v215 = vshrl.u32 %v214, 6
    %v216 = vand.u32 %v214, 63
    %v217 = vsub.s32 0, %v216
    %v218 = vsel %vm212, %v217, %v216
    %v219 = vrot.slane %v74, 6
    %v220 = vrot.slane %v75, 6
    %v221 = vrot.slane %v76, 6
    %v222 = vrot.slane %v77, 6
    %v223 = vrot.slane %v78, 6
    %v224 = vrot.slane %v79, 6
    %v225 = vrot.slane %v80, 6
    %v226 = vrot.slane %v81, 6
    %v227 = vrot.slane %v82, 6
    %v228 = vrot.slane %v83, 6
    %v229 = vrot.slane %v84, 6
    %v230 = vrot.slane %v85, 6
    %v231 = vrot.slane %v86, 6
    %v232 = vrot.slane %v87, 6
    %v233 = vrot.slane %v88, 6
    %v234 = vrot.slane %v89, 6
    %vm235 = vcmp.lt.s32.totalorder %v91, 2
    %v236 = vsel %vm235, %v233, %v234
    %v237 = vsel %vm235, %v232, %v233
    %v238 = vsel %vm235, %v231, %v232
    %v239 = vsel %vm235, %v230, %v231
    %v240 = vsel %vm235, %v229, %v230
    %v241 = vsel %vm235, %v228, %v229
    %v242 = vsel %vm235, %v227, %v228
    %v243 = vsel %vm235, %v226, %v227
    %v244 = vsel %vm235, %v225, %v226
    %v245 = vsel %vm235, %v224, %v225
    %v246 = vsel %vm235, %v223, %v224
    %v247 = vsel %vm235, %v222, %v223
    %v248 = vsel %vm235, %v221, %v222
    %v249 = vsel %vm235, %v220, %v221
    %v250 = vsel %vm235, %v219, %v220
    %v251 = vsel %vm235, %v234, %v219
    %v252 = vadd.s32 %v113, 4294967294
    %v253 = vadd.s32 %v120, 4294967294
    %v254 = vadd.s32 %v127, 4294967294
    %v255 = vadd.s32 %v134, 4294967294
    %v256 = vadd.s32 %v141, 4294967294
    %v257 = vadd.s32 %v148, 4294967294
    %v258 = vadd.s32 %v155, 4294967294
    %v259 = vadd.s32 %v162, 4294967294
    %v260 = vadd.s32 %v169, 4294967294
    %v261 = vadd.s32 %v176, 4294967294
    %v262 = vadd.s32 %v183, 4294967294
    %v263 = vadd.s32 %v190, 4294967294
    %v264 = vadd.s32 %v197, 4294967294
    %v265 = vadd.s32 %v204, 4294967294
    %v266 = vadd.s32 %v211, 4294967294
    %v267 = vadd.s32 %v218, 4294967294
    %vm268 = vcmp.ge.s32.totalorder %v252, 0
    %vm269 = vcmp.ge.s32.totalorder %v253, 0
    %vm270 = vcmp.ge.s32.totalorder %v254, 0
    %vm271 = vcmp.ge.s32.totalorder %v255, 0
    %vm272 = vcmp.ge.s32.totalorder %v256, 0
    %vm273 = vcmp.ge.s32.totalorder %v257, 0
    %vm274 = vcmp.ge.s32.totalorder %v258, 0
    %vm275 = vcmp.ge.s32.totalorder %v259, 0
    %vm276 = vcmp.ge.s32.totalorder %v260, 0
    %vm277 = vcmp.ge.s32.totalorder %v261, 0
    %vm278 = vcmp.ge.s32.totalorder %v262, 0
    %vm279 = vcmp.ge.s32.totalorder %v263, 0
    %vm280 = vcmp.ge.s32.totalorder %v264, 0
    %vm281 = vcmp.ge.s32.totalorder %v265, 0
    %vm282 = vcmp.ge.s32.totalorder %v266, 0
    %vm283 = vcmp.ge.s32.totalorder %v267, 0
    %vm284 = vcmp.lt.s32.totalorder %v252, 64
    %vm285 = vcmp.lt.s32.totalorder %v253, 64
    %vm286 = vcmp.lt.s32.totalorder %v254, 64
    %vm287 = vcmp.lt.s32.totalorder %v255, 64
    %vm288 = vcmp.lt.s32.totalorder %v256, 64
    %vm289 = vcmp.lt.s32.totalorder %v257, 64
    %vm290 = vcmp.lt.s32.totalorder %v258, 64
    %vm291 = vcmp.lt.s32.totalorder %v259, 64
    %vm292 = vcmp.lt.s32.totalorder %v260, 64
    %vm293 = vcmp.lt.s32.totalorder %v261, 64
    %vm294 = vcmp.lt.s32.totalorder %v262, 64
    %vm295 = vcmp.lt.s32.totalorder %v263, 64
    %vm296 = vcmp.lt.s32.totalorder %v264, 64
    %vm297 = vcmp.lt.s32.totalorder %v265, 64
    %vm298 = vcmp.lt.s32.totalorder %v266, 64
    %vm299 = vcmp.lt.s32.totalorder %v267, 64
    %vm300 = vmand %vm268, %vm284
    %vm301 = vmand %vm269, %vm285
    %vm302 = vmand %vm270, %vm286
    %vm303 = vmand %vm271, %vm287
    %vm304 = vmand %vm272, %vm288
    %vm305 = vmand %vm273, %vm289
    %vm306 = vmand %vm274, %vm290
    %vm307 = vmand %vm275, %vm291
    %vm308 = vmand %vm276, %vm292
    %vm309 = vmand %vm277, %vm293
    %vm310 = vmand %vm278, %vm294
    %vm311 = vmand %vm279, %vm295
    %vm312 = vmand %vm280, %vm296
    %vm313 = vmand %vm281, %vm297
    %vm314 = vmand %vm282, %vm298
    %vm315 = vmand %vm283, %vm299
    %v316 = vsel %vm300, 1, 0
    %v317 = vsel %vm301, 1, 0
    %v318 = vsel %vm302, 1, 0
    %v319 = vsel %vm303, 1, 0
    %v320 = vsel %vm304, 1, 0
    %v321 = vsel %vm305, 1, 0
    %v322 = vsel %vm306, 1, 0
    %v323 = vsel %vm307, 1, 0
    %v324 = vsel %vm308, 1, 0
    %v325 = vsel %vm309, 1, 0
    %v326 = vsel %vm310, 1, 0
    %v327 = vsel %vm311, 1, 0
    %v328 = vsel %vm312, 1, 0
    %v329 = vsel %vm313, 1, 0
    %v330 = vsel %vm314, 1, 0
    %v331 = vsel %vm315, 1, 0
    %vm332 = vcmp.eq.s32.totalorder %v316, 1
    %vm333 = vcmp.eq.s32.totalorder %v317, 1
    %vm334 = vcmp.eq.s32.totalorder %v318, 1
    %vm335 = vcmp.eq.s32.totalorder %v319, 1
    %vm336 = vcmp.eq.s32.totalorder %v320, 1
    %vm337 = vcmp.eq.s32.totalorder %v321, 1
    %vm338 = vcmp.eq.s32.totalorder %v322, 1
    %vm339 = vcmp.eq.s32.totalorder %v323, 1
    %vm340 = vcmp.eq.s32.totalorder %v324, 1
    %vm341 = vcmp.eq.s32.totalorder %v325, 1
    %vm342 = vcmp.eq.s32.totalorder %v326, 1
    %vm343 = vcmp.eq.s32.totalorder %v327, 1
    %vm344 = vcmp.eq.s32.totalorder %v328, 1
    %vm345 = vcmp.eq.s32.totalorder %v329, 1
    %vm346 = vcmp.eq.s32.totalorder %v330, 1
    %vm347 = vcmp.eq.s32.totalorder %v331, 1
    %v348 = vsel %vm332, %v251, 0.0
    %v349 = vsel %vm333, %v250, 0.0
    %v350 = vsel %vm334, %v249, 0.0
    %v351 = vsel %vm335, %v248, 0.0
    %v352 = vsel %vm336, %v247, 0.0
    %v353 = vsel %vm337, %v246, 0.0
    %v354 = vsel %vm338, %v245, 0.0
    %v355 = vsel %vm339, %v244, 0.0
    %v356 = vsel %vm340, %v243, 0.0
    %v357 = vsel %vm341, %v242, 0.0
    %v358 = vsel %vm342, %v241, 0.0
    %v359 = vsel %vm343, %v240, 0.0
    %v360 = vsel %vm344, %v239, 0.0
    %v361 = vsel %vm345, %v238, 0.0
    %v362 = vsel %vm346, %v237, 0.0
    %v363 = vsel %vm347, %v236, 0.0
    %v364 = vld [vmem:[#allocation5] sm:$0xff]
    %v365 = vld [vmem:[#allocation5 + $0x8] sm:$0xff]
    %v366 = vld [vmem:[#allocation5 + $0x10] sm:$0xff]
    %v367 = vld [vmem:[#allocation5 + $0x18] sm:$0xff]
    %v368 = vld [vmem:[#allocation5 + $0x20] sm:$0xff]
    %v369 = vld [vmem:[#allocation5 + $0x28] sm:$0xff]
    %v370 = vld [vmem:[#allocation5 + $0x30] sm:$0xff]
    %v371 = vld [vmem:[#allocation5 + $0x38] sm:$0xff]
    %v372 = vld [vmem:[#allocation5 + $0x40] sm:$0xff]
    %v373 = vld [vmem:[#allocation5 + $0x48] sm:$0xff]
    %v374 = vld [vmem:[#allocation5 + $0x50] sm:$0xff]
    %v375 = vld [vmem:[#allocation5 + $0x58] sm:$0xff]
    %v376 = vld [vmem:[#allocation5 + $0x60] sm:$0xff]
    %v377 = vld [vmem:[#allocation5 + $0x68] sm:$0xff]
    %v378 = vld [vmem:[#allocation5 + $0x70] sm:$0xff]
    %v379 = vld [vmem:[#allocation5 + $0x78] sm:$0xff]
    %v380 = vrot.slane %v74, 7
    %v381 = vrot.slane %v75, 7
    %v382 = vrot.slane %v76, 7
    %v383 = vrot.slane %v77, 7
    %v384 = vrot.slane %v78, 7
    %v385 = vrot.slane %v79, 7
    %v386 = vrot.slane %v80, 7
    %v387 = vrot.slane %v81, 7
    %v388 = vrot.slane %v82, 7
    %v389 = vrot.slane %v83, 7
    %v390 = vrot.slane %v84, 7
    %v391 = vrot.slane %v85, 7
    %v392 = vrot.slane %v86, 7
    %v393 = vrot.slane %v87, 7
    %v394 = vrot.slane %v88, 7
    %v395 = vrot.slane %v89, 7
    %vm396 = vcmp.lt.s32.totalorder %v91, 1
    %v397 = vsel %vm396, %v394, %v395
    %v398 = vsel %vm396, %v393, %v394
    %v399 = vsel %vm396, %v392, %v393
    %v400 = vsel %vm396, %v391, %v392
    %v401 = vsel %vm396, %v390, %v391
    %v402 = vsel %vm396, %v389, %v390
    %v403 = vsel %vm396, %v388, %v389
    %v404 = vsel %vm396, %v387, %v388
    %v405 = vsel %vm396, %v386, %v387
    %v406 = vsel %vm396, %v385, %v386
    %v407 = vsel %vm396, %v384, %v385
    %v408 = vsel %vm396, %v383, %v384
    %v409 = vsel %vm396, %v382, %v383
    %v410 = vsel %vm396, %v381, %v382
    %v411 = vsel %vm396, %v380, %v381
    %v412 = vsel %vm396, %v395, %v380
    %v413 = vadd.s32 %v113, 4294967295
    %v414 = vadd.s32 %v120, 4294967295
    %v415 = vadd.s32 %v127, 4294967295
    %v416 = vadd.s32 %v134, 4294967295
    %v417 = vadd.s32 %v141, 4294967295
    %v418 = vadd.s32 %v148, 4294967295
    %v419 = vadd.s32 %v155, 4294967295
    %v420 = vadd.s32 %v162, 4294967295
    %v421 = vadd.s32 %v169, 4294967295
    %v422 = vadd.s32 %v176, 4294967295
    %v423 = vadd.s32 %v183, 4294967295
    %v424 = vadd.s32 %v190, 4294967295
    %v425 = vadd.s32 %v197, 4294967295
    %v426 = vadd.s32 %v204, 4294967295
    %v427 = vadd.s32 %v211, 4294967295
    %v428 = vadd.s32 %v218, 4294967295
    %vm429 = vcmp.ge.s32.totalorder %v413, 0
    %vm430 = vcmp.ge.s32.totalorder %v414, 0
    %vm431 = vcmp.ge.s32.totalorder %v415, 0
    %vm432 = vcmp.ge.s32.totalorder %v416, 0
    %vm433 = vcmp.ge.s32.totalorder %v417, 0
    %vm434 = vcmp.ge.s32.totalorder %v418, 0
    %vm435 = vcmp.ge.s32.totalorder %v419, 0
    %vm436 = vcmp.ge.s32.totalorder %v420, 0
    %vm437 = vcmp.ge.s32.totalorder %v421, 0
    %vm438 = vcmp.ge.s32.totalorder %v422, 0
    %vm439 = vcmp.ge.s32.totalorder %v423, 0
    %vm440 = vcmp.ge.s32.totalorder %v424, 0
    %vm441 = vcmp.ge.s32.totalorder %v425, 0
    %vm442 = vcmp.ge.s32.totalorder %v426, 0
    %vm443 = vcmp.ge.s32.totalorder %v427, 0
    %vm444 = vcmp.ge.s32.totalorder %v428, 0
    %vm445 = vcmp.lt.s32.totalorder %v413, 64
    %vm446 = vcmp.lt.s32.totalorder %v414, 64
    %vm447 = vcmp.lt.s32.totalorder %v415, 64
    %vm448 = vcmp.lt.s32.totalorder %v416, 64
    %vm449 = vcmp.lt.s32.totalorder %v417, 64
    %vm450 = vcmp.lt.s32.totalorder %v418, 64
    %vm451 = vcmp.lt.s32.totalorder %v419, 64
    %vm452 = vcmp.lt.s32.totalorder %v420, 64
    %vm453 = vcmp.lt.s32.totalorder %v421, 64
    %vm454 = vcmp.lt.s32.totalorder %v422, 64
    %vm455 = vcmp.lt.s32.totalorder %v423, 64
    %vm456 = vcmp.lt.s32.totalorder %v424, 64
    %vm457 = vcmp.lt.s32.totalorder %v425, 64
    %vm458 = vcmp.lt.s32.totalorder %v426, 64
    %vm459 = vcmp.lt.s32.totalorder %v427, 64
    %vm460 = vcmp.lt.s32.totalorder %v428, 64
    %vm461 = vmand %vm429, %vm445
    %vm462 = vmand %vm430, %vm446
    %vm463 = vmand %vm431, %vm447
    %vm464 = vmand %vm432, %vm448
    %vm465 = vmand %vm433, %vm449
    %vm466 = vmand %vm434, %vm450
    %vm467 = vmand %vm435, %vm451
    %vm468 = vmand %vm436, %vm452
    %vm469 = vmand %vm437, %vm453
    %vm470 = vmand %vm438, %vm454
    %vm471 = vmand %vm439, %vm455
    %vm472 = vmand %vm440, %vm456
    %vm473 = vmand %vm441, %vm457
    %vm474 = vmand %vm442, %vm458
    %vm475 = vmand %vm443, %vm459
    %vm476 = vmand %vm444, %vm460
    %v477 = vsel %vm461, 1, 0
    %v478 = vsel %vm462, 1, 0
    %v479 = vsel %vm463, 1, 0
    %v480 = vsel %vm464, 1, 0
    %v481 = vsel %vm465, 1, 0
    %v482 = vsel %vm466, 1, 0
    %v483 = vsel %vm467, 1, 0
    %v484 = vsel %vm468, 1, 0
    %v485 = vsel %vm469, 1, 0
    %v486 = vsel %vm470, 1, 0
    %v487 = vsel %vm471, 1, 0
    %v488 = vsel %vm472, 1, 0
    %v489 = vsel %vm473, 1, 0
    %v490 = vsel %vm474, 1, 0
    %v491 = vsel %vm475, 1, 0
    %v492 = vsel %vm476, 1, 0
    %vm493 = vcmp.eq.s32.totalorder %v477, 1
    %vm494 = vcmp.eq.s32.totalorder %v478, 1
    %vm495 = vcmp.eq.s32.totalorder %v479, 1
    %vm496 = vcmp.eq.s32.totalorder %v480, 1
    %vm497 = vcmp.eq.s32.totalorder %v481, 1
    %vm498 = vcmp.eq.s32.totalorder %v482, 1
    %vm499 = vcmp.eq.s32.totalorder %v483, 1
    %vm500 = vcmp.eq.s32.totalorder %v484, 1
    %vm501 = vcmp.eq.s32.totalorder %v485, 1
    %vm502 = vcmp.eq.s32.totalorder %v486, 1
    %vm503 = vcmp.eq.s32.totalorder %v487, 1
    %vm504 = vcmp.eq.s32.totalorder %v488, 1
    %vm505 = vcmp.eq.s32.totalorder %v489, 1
    %vm506 = vcmp.eq.s32.totalorder %v490, 1
    %vm507 = vcmp.eq.s32.totalorder %v491, 1
    %vm508 = vcmp.eq.s32.totalorder %v492, 1
    %v509 = vsel %vm493, %v412, 0.0
    %v510 = vsel %vm494, %v411, 0.0
    %v511 = vsel %vm495, %v410, 0.0
    %v512 = vsel %vm496, %v409, 0.0
    %v513 = vsel %vm497, %v408, 0.0
    %v514 = vsel %vm498, %v407, 0.0
    %v515 = vsel %vm499, %v406, 0.0
    %v516 = vsel %vm500, %v405, 0.0
    %v517 = vsel %vm501, %v404, 0.0
    %v518 = vsel %vm502, %v403, 0.0
    %v519 = vsel %vm503, %v402, 0.0
    %v520 = vsel %vm504, %v401, 0.0
    %v521 = vsel %vm505, %v400, 0.0
    %v522 = vsel %vm506, %v399, 0.0
    %v523 = vsel %vm507, %v398, 0.0
    %v524 = vsel %vm508, %v397, 0.0
    %s525 = scalar_lea.vmem [#allocation5], 128
    %v526 = vld [vmem:[%s525] sm:$0xff]
    %v527 = vld [vmem:[%s525 + $0x8] sm:$0xff]
    %v528 = vld [vmem:[%s525 + $0x10] sm:$0xff]
    %v529 = vld [vmem:[%s525 + $0x18] sm:$0xff]
    %v530 = vld [vmem:[%s525 + $0x20] sm:$0xff]
    %v531 = vld [vmem:[%s525 + $0x28] sm:$0xff]
    %v532 = vld [vmem:[%s525 + $0x30] sm:$0xff]
    %v533 = vld [vmem:[%s525 + $0x38] sm:$0xff]
    %v534 = vld [vmem:[%s525 + $0x40] sm:$0xff]
    %v535 = vld [vmem:[%s525 + $0x48] sm:$0xff]
    %v536 = vld [vmem:[%s525 + $0x50] sm:$0xff]
    %v537 = vld [vmem:[%s525 + $0x58] sm:$0xff]
    %v538 = vld [vmem:[%s525 + $0x60] sm:$0xff]
    %v539 = vld [vmem:[%s525 + $0x68] sm:$0xff]
    %v540 = vld [vmem:[%s525 + $0x70] sm:$0xff]
    %v541 = vld [vmem:[%s525 + $0x78] sm:$0xff]
    %542 = vmatpush.msra.mxu0 %v541
    %543 = vmatpush.msra.mxu0 %v540
    %544 = vmatpush.msra.mxu0 %v539
    %545 = vmatpush.msra.mxu0 %v538
    %546 = vmatpush.msra.mxu0 %v537
    %547 = vmatpush.msra.mxu0 %v536
    %548 = vmatpush.msra.mxu0 %v535
    %549 = vmatpush.msra.mxu0 %v534
    %550 = vmatpush.msra.mxu0 %v533
    %551 = vmatpush.msra.mxu0 %v532
    %552 = vmatpush.msra.mxu0 %v531
    %553 = vmatpush.msra.mxu0 %v530
    %554 = vmatpush.msra.mxu0 %v529
    %555 = vmatpush.msra.mxu0 %v528
    %556 = vmatpush.msra.mxu0 %v527
    %557 = vmatpush.msra.mxu0 %v526
    %558 = vmatmul.f32.gmra.mxu0 %v509
    %v559 = vpop.f32.mrf.mxu0
    %v560 = vadd.f32 0.0, %v559
    %561 = vmatmul.f32.gmra.mxu0 %v510
    %v562 = vpop.f32.mrf.mxu0
    %v563 = vadd.f32 0.0, %v562
    %564 = vmatmul.f32.gmra.mxu0 %v511
    %v565 = vpop.f32.mrf.mxu0
    %v566 = vadd.f32 0.0, %v565
    %567 = vmatmul.f32.gmra.mxu0 %v512
    %v568 = vpop.f32.mrf.mxu0
    %v569 = vadd.f32 0.0, %v568
    %570 = vmatmul.f32.gmra.mxu0 %v513
    %v571 = vpop.f32.mrf.mxu0
    %v572 = vadd.f32 0.0, %v571
    %573 = vmatmul.f32.gmra.mxu0 %v514
    %v574 = vpop.f32.mrf.mxu0
    %v575 = vadd.f32 0.0, %v574
    %576 = vmatmul.f32.gmra.mxu0 %v515
    %v577 = vpop.f32.mrf.mxu0
    %v578 = vadd.f32 0.0, %v577
    %579 = vmatmul.f32.gmra.mxu0 %v516
    %v580 = vpop.f32.mrf.mxu0
    %v581 = vadd.f32 0.0, %v580
    %582 = vmatmul.f32.gmra.mxu0 %v517
    %v583 = vpop.f32.mrf.mxu0
    %v584 = vadd.f32 0.0, %v583
    %585 = vmatmul.f32.gmra.mxu0 %v518
    %v586 = vpop.f32.mrf.mxu0
    %v587 = vadd.f32 0.0, %v586
    %588 = vmatmul.f32.gmra.mxu0 %v519
    %v589 = vpop.f32.mrf.mxu0
    %v590 = vadd.f32 0.0, %v589
    %591 = vmatmul.f32.gmra.mxu0 %v520
    %v592 = vpop.f32.mrf.mxu0
    %v593 = vadd.f32 0.0, %v592
    %594 = vmatmul.f32.gmra.mxu0 %v521
    %v595 = vpop.f32.mrf.mxu0
    %v596 = vadd.f32 0.0, %v595
    %597 = vmatmul.f32.gmra.mxu0 %v522
    %v598 = vpop.f32.mrf.mxu0
    %v599 = vadd.f32 0.0, %v598
    %600 = vmatmul.f32.gmra.mxu0 %v523
    %v601 = vpop.f32.mrf.mxu0
    %v602 = vadd.f32 0.0, %v601
    %603 = vmatmul.f32.gmra.mxu0 %v524
    %v604 = vpop.f32.mrf.mxu0
    %v605 = vadd.f32 0.0, %v604
    %606 = vdwg.mxu0
    %607 = vmatpush.msra.mxu0 %v379
    %608 = vmatpush.msra.mxu0 %v378
    %609 = vmatpush.msra.mxu0 %v377
    %610 = vmatpush.msra.mxu0 %v376
    %611 = vmatpush.msra.mxu0 %v375
    %612 = vmatpush.msra.mxu0 %v374
    %613 = vmatpush.msra.mxu0 %v373
    %614 = vmatpush.msra.mxu0 %v372
    %615 = vmatpush.msra.mxu0 %v371
    %616 = vmatpush.msra.mxu0 %v370
    %617 = vmatpush.msra.mxu0 %v369
    %618 = vmatpush.msra.mxu0 %v368
    %619 = vmatpush.msra.mxu0 %v367
    %620 = vmatpush.msra.mxu0 %v366
    %621 = vmatpush.msra.mxu0 %v365
    %622 = vmatpush.msra.mxu0 %v364
    %623 = vmatmul.f32.gmra.mxu0 %v348
    %v624 = vpop.f32.mrf.mxu0
    %v625 = vadd.f32 %v560, %v624
    %626 = vmatmul.f32.gmra.mxu0 %v349
    %v627 = vpop.f32.mrf.mxu0
    %v628 = vadd.f32 %v563, %v627
    %629 = vmatmul.f32.gmra.mxu0 %v350
    %v630 = vpop.f32.mrf.mxu0
    %v631 = vadd.f32 %v566, %v630
    %632 = vmatmul.f32.gmra.mxu0 %v351
    %v633 = vpop.f32.mrf.mxu0
    %v634 = vadd.f32 %v569, %v633
    %635 = vmatmul.f32.gmra.mxu0 %v352
    %v636 = vpop.f32.mrf.mxu0
    %v637 = vadd.f32 %v572, %v636
    %638 = vmatmul.f32.gmra.mxu0 %v353
    %v639 = vpop.f32.mrf.mxu0
    %v640 = vadd.f32 %v575, %v639
    %641 = vmatmul.f32.gmra.mxu0 %v354
    %v642 = vpop.f32.mrf.mxu0
    %v643 = vadd.f32 %v578, %v642
    %644 = vmatmul.f32.gmra.mxu0 %v355
    %v645 = vpop.f32.mrf.mxu0
    %v646 = vadd.f32 %v581, %v645
    %647 = vmatmul.f32.gmra.mxu0 %v356
    %v648 = vpop.f32.mrf.mxu0
    %v649 = vadd.f32 %v584, %v648
    %650 = vmatmul.f32.gmra.mxu0 %v357
    %v651 = vpop.f32.mrf.mxu0
    %v652 = vadd.f32 %v587, %v651
    %653 = vmatmul.f32.gmra.mxu0 %v358
    %v654 = vpop.f32.mrf.mxu0
    %v655 = vadd.f32 %v590, %v654
    %656 = vmatmul.f32.gmra.mxu0 %v359
    %v657 = vpop.f32.mrf.mxu0
    %v658 = vadd.f32 %v593, %v657
    %659 = vmatmul.f32.gmra.mxu0 %v360
    %v660 = vpop.f32.mrf.mxu0
    %v661 = vadd.f32 %v596, %v660
    %662 = vmatmul.f32.gmra.mxu0 %v361
    %v663 = vpop.f32.mrf.mxu0
    %v664 = vadd.f32 %v599, %v663
    %665 = vmatmul.f32.gmra.mxu0 %v362
    %v666 = vpop.f32.mrf.mxu0
    %v667 = vadd.f32 %v602, %v666
    %668 = vmatmul.f32.gmra.mxu0 %v363
    %v669 = vpop.f32.mrf.mxu0
    %v670 = vadd.f32 %v605, %v669
    %671 = vdwg.mxu0
    %s672 = scalar_lea.vmem [#allocation5], 256
    %v673 = vld [vmem:[%s672] sm:$0xff]
    %v674 = vld [vmem:[%s672 + $0x8] sm:$0xff]
    %v675 = vld [vmem:[%s672 + $0x10] sm:$0xff]
    %v676 = vld [vmem:[%s672 + $0x18] sm:$0xff]
    %v677 = vld [vmem:[%s672 + $0x20] sm:$0xff]
    %v678 = vld [vmem:[%s672 + $0x28] sm:$0xff]
    %v679 = vld [vmem:[%s672 + $0x30] sm:$0xff]
    %v680 = vld [vmem:[%s672 + $0x38] sm:$0xff]
    %v681 = vld [vmem:[%s672 + $0x40] sm:$0xff]
    %v682 = vld [vmem:[%s672 + $0x48] sm:$0xff]
    %v683 = vld [vmem:[%s672 + $0x50] sm:$0xff]
    %v684 = vld [vmem:[%s672 + $0x58] sm:$0xff]
    %v685 = vld [vmem:[%s672 + $0x60] sm:$0xff]
    %v686 = vld [vmem:[%s672 + $0x68] sm:$0xff]
    %v687 = vld [vmem:[%s672 + $0x70] sm:$0xff]
    %v688 = vld [vmem:[%s672 + $0x78] sm:$0xff]
    %689 = vmatpush.msra.mxu0 %v688
    %690 = vmatpush.msra.mxu0 %v687
    %691 = vmatpush.msra.mxu0 %v686
    %692 = vmatpush.msra.mxu0 %v685
    %693 = vmatpush.msra.mxu0 %v684
    %694 = vmatpush.msra.mxu0 %v683
    %695 = vmatpush.msra.mxu0 %v682
    %696 = vmatpush.msra.mxu0 %v681
    %697 = vmatpush.msra.mxu0 %v680
    %698 = vmatpush.msra.mxu0 %v679
    %699 = vmatpush.msra.mxu0 %v678
    %700 = vmatpush.msra.mxu0 %v677
    %701 = vmatpush.msra.mxu0 %v676
    %702 = vmatpush.msra.mxu0 %v675
    %703 = vmatpush.msra.mxu0 %v674
    %704 = vmatpush.msra.mxu0 %v673
    %705 = vmatmul.f32.gmra.mxu0 %v74
    %v706 = vpop.f32.mrf.mxu0
    %v707 = vadd.f32 0.0, %v706
    %708 = vmatmul.f32.gmra.mxu0 %v75
    %v709 = vpop.f32.mrf.mxu0
    %v710 = vadd.f32 0.0, %v709
    %711 = vmatmul.f32.gmra.mxu0 %v76
    %v712 = vpop.f32.mrf.mxu0
    %v713 = vadd.f32 0.0, %v712
    %714 = vmatmul.f32.gmra.mxu0 %v77
    %v715 = vpop.f32.mrf.mxu0
    %v716 = vadd.f32 0.0, %v715
    %717 = vmatmul.f32.gmra.mxu0 %v78
    %v718 = vpop.f32.mrf.mxu0
    %v719 = vadd.f32 0.0, %v718
    %720 = vmatmul.f32.gmra.mxu0 %v79
    %v721 = vpop.f32.mrf.mxu0
    %v722 = vadd.f32 0.0, %v721
    %723 = vmatmul.f32.gmra.mxu0 %v80
    %v724 = vpop.f32.mrf.mxu0
    %v725 = vadd.f32 0.0, %v724
    %726 = vmatmul.f32.gmra.mxu0 %v81
    %v727 = vpop.f32.mrf.mxu0
    %v728 = vadd.f32 0.0, %v727
    %729 = vmatmul.f32.gmra.mxu0 %v82
    %v730 = vpop.f32.mrf.mxu0
    %v731 = vadd.f32 0.0, %v730
    %732 = vmatmul.f32.gmra.mxu0 %v83
    %v733 = vpop.f32.mrf.mxu0
    %v734 = vadd.f32 0.0, %v733
    %735 = vmatmul.f32.gmra.mxu0 %v84
    %v736 = vpop.f32.mrf.mxu0
    %v737 = vadd.f32 0.0, %v736
    %738 = vmatmul.f32.gmra.mxu0 %v85
    %v739 = vpop.f32.mrf.mxu0
    %v740 = vadd.f32 0.0, %v739
    %741 = vmatmul.f32.gmra.mxu0 %v86
    %v742 = vpop.f32.mrf.mxu0
    %v743 = vadd.f32 0.0, %v742
    %744 = vmatmul.f32.gmra.mxu0 %v87
    %v745 = vpop.f32.mrf.mxu0
    %v746 = vadd.f32 0.0, %v745
    %747 = vmatmul.f32.gmra.mxu0 %v88
    %v748 = vpop.f32.mrf.mxu0
    %v749 = vadd.f32 0.0, %v748
    %750 = vmatmul.f32.gmra.mxu0 %v89
    %v751 = vpop.f32.mrf.mxu0
    %v752 = vadd.f32 0.0, %v751
    %753 = vdwg.mxu0
    %v754 = vadd.f32 %v625, %v707
    %v755 = vadd.f32 %v628, %v710
    %v756 = vadd.f32 %v631, %v713
    %v757 = vadd.f32 %v634, %v716
    %v758 = vadd.f32 %v637, %v719
    %v759 = vadd.f32 %v640, %v722
    %v760 = vadd.f32 %v643, %v725
    %v761 = vadd.f32 %v646, %v728
    %v762 = vadd.f32 %v649, %v731
    %v763 = vadd.f32 %v652, %v734
    %v764 = vadd.f32 %v655, %v737
    %v765 = vadd.f32 %v658, %v740
    %v766 = vadd.f32 %v661, %v743
    %v767 = vadd.f32 %v664, %v746
    %v768 = vadd.f32 %v667, %v749
    %v769 = vadd.f32 %v670, %v752
    %v770 = vrot.slane %v74, 1
    %v771 = vrot.slane %v75, 1
    %v772 = vrot.slane %v76, 1
    %v773 = vrot.slane %v77, 1
    %v774 = vrot.slane %v78, 1
    %v775 = vrot.slane %v79, 1
    %v776 = vrot.slane %v80, 1
    %v777 = vrot.slane %v81, 1
    %v778 = vrot.slane %v82, 1
    %v779 = vrot.slane %v83, 1
    %v780 = vrot.slane %v84, 1
    %v781 = vrot.slane %v85, 1
    %v782 = vrot.slane %v86, 1
    %v783 = vrot.slane %v87, 1
    %v784 = vrot.slane %v88, 1
    %v785 = vrot.slane %v89, 1
    %vm786 = vcmp.lt.s32.totalorder %v91, 7
    %v787 = vsel %vm786, %v784, %v785
    %v788 = vsel %vm786, %v783, %v784
    %v789 = vsel %vm786, %v782, %v783
    %v790 = vsel %vm786, %v781, %v782
    %v791 = vsel %vm786, %v780, %v781
    %v792 = vsel %vm786, %v779, %v780
    %v793 = vsel %vm786, %v778, %v779
    %v794 = vsel %vm786, %v777, %v778
    %v795 = vsel %vm786, %v776, %v777
    %v796 = vsel %vm786, %v775, %v776
    %v797 = vsel %vm786, %v774, %v775
    %v798 = vsel %vm786, %v773, %v774
    %v799 = vsel %vm786, %v772, %v773
    %v800 = vsel %vm786, %v771, %v772
    %v801 = vsel %vm786, %v770, %v771
    %v802 = vsel %vm786, %v785, %v770
    %v803 = vadd.s32 %v113, 1
    %v804 = vadd.s32 %v120, 1
    %v805 = vadd.s32 %v127, 1
    %v806 = vadd.s32 %v134, 1
    %v807 = vadd.s32 %v141, 1
    %v808 = vadd.s32 %v148, 1
    %v809 = vadd.s32 %v155, 1
    %v810 = vadd.s32 %v162, 1
    %v811 = vadd.s32 %v169, 1
    %v812 = vadd.s32 %v176, 1
    %v813 = vadd.s32 %v183, 1
    %v814 = vadd.s32 %v190, 1
    %v815 = vadd.s32 %v197, 1
    %v816 = vadd.s32 %v204, 1
    %v817 = vadd.s32 %v211, 1
    %v818 = vadd.s32 %v218, 1
    %vm819 = vcmp.ge.s32.totalorder %v803, 0
    %vm820 = vcmp.ge.s32.totalorder %v804, 0
    %vm821 = vcmp.ge.s32.totalorder %v805, 0
    %vm822 = vcmp.ge.s32.totalorder %v806, 0
    %vm823 = vcmp.ge.s32.totalorder %v807, 0
    %vm824 = vcmp.ge.s32.totalorder %v808, 0
    %vm825 = vcmp.ge.s32.totalorder %v809, 0
    %vm826 = vcmp.ge.s32.totalorder %v810, 0
    %vm827 = vcmp.ge.s32.totalorder %v811, 0
    %vm828 = vcmp.ge.s32.totalorder %v812, 0
    %vm829 = vcmp.ge.s32.totalorder %v813, 0
    %vm830 = vcmp.ge.s32.totalorder %v814, 0
    %vm831 = vcmp.ge.s32.totalorder %v815, 0
    %vm832 = vcmp.ge.s32.totalorder %v816, 0
    %vm833 = vcmp.ge.s32.totalorder %v817, 0
    %vm834 = vcmp.ge.s32.totalorder %v818, 0
    %vm835 = vcmp.lt.s32.totalorder %v803, 64
    %vm836 = vcmp.lt.s32.totalorder %v804, 64
    %vm837 = vcmp.lt.s32.totalorder %v805, 64
    %vm838 = vcmp.lt.s32.totalorder %v806, 64
    %vm839 = vcmp.lt.s32.totalorder %v807, 64
    %vm840 = vcmp.lt.s32.totalorder %v808, 64
    %vm841 = vcmp.lt.s32.totalorder %v809, 64
    %vm842 = vcmp.lt.s32.totalorder %v810, 64
    %vm843 = vcmp.lt.s32.totalorder %v811, 64
    %vm844 = vcmp.lt.s32.totalorder %v812, 64
    %vm845 = vcmp.lt.s32.totalorder %v813, 64
    %vm846 = vcmp.lt.s32.totalorder %v814, 64
    %vm847 = vcmp.lt.s32.totalorder %v815, 64
    %vm848 = vcmp.lt.s32.totalorder %v816, 64
    %vm849 = vcmp.lt.s32.totalorder %v817, 64
    %vm850 = vcmp.lt.s32.totalorder %v818, 64
    %vm851 = vmand %vm819, %vm835
    %vm852 = vmand %vm820, %vm836
    %vm853 = vmand %vm821, %vm837
    %vm854 = vmand %vm822, %vm838
    %vm855 = vmand %vm823, %vm839
    %vm856 = vmand %vm824, %vm840
    %vm857 = vmand %vm825, %vm841
    %vm858 = vmand %vm826, %vm842
    %vm859 = vmand %vm827, %vm843
    %vm860 = vmand %vm828, %vm844
    %vm861 = vmand %vm829, %vm845
    %vm862 = vmand %vm830, %vm846
    %vm863 = vmand %vm831, %vm847
    %vm864 = vmand %vm832, %vm848
    %vm865 = vmand %vm833, %vm849
    %vm866 = vmand %vm834, %vm850
    %v867 = vsel %vm851, 1, 0
    %v868 = vsel %vm852, 1, 0
    %v869 = vsel %vm853, 1, 0
    %v870 = vsel %vm854, 1, 0
    %v871 = vsel %vm855, 1, 0
    %v872 = vsel %vm856, 1, 0
    %v873 = vsel %vm857, 1, 0
    %v874 = vsel %vm858, 1, 0
    %v875 = vsel %vm859, 1, 0
    %v876 = vsel %vm860, 1, 0
    %v877 = vsel %vm861, 1, 0
    %v878 = vsel %vm862, 1, 0
    %v879 = vsel %vm863, 1, 0
    %v880 = vsel %vm864, 1, 0
    %v881 = vsel %vm865, 1, 0
    %v882 = vsel %vm866, 1, 0
    %vm883 = vcmp.eq.s32.totalorder %v867, 1
    %vm884 = vcmp.eq.s32.totalorder %v868, 1
    %vm885 = vcmp.eq.s32.totalorder %v869, 1
    %vm886 = vcmp.eq.s32.totalorder %v870, 1
    %vm887 = vcmp.eq.s32.totalorder %v871, 1
    %vm888 = vcmp.eq.s32.totalorder %v872, 1
    %vm889 = vcmp.eq.s32.totalorder %v873, 1
    %vm890 = vcmp.eq.s32.totalorder %v874, 1
    %vm891 = vcmp.eq.s32.totalorder %v875, 1
    %vm892 = vcmp.eq.s32.totalorder %v876, 1
    %vm893 = vcmp.eq.s32.totalorder %v877, 1
    %vm894 = vcmp.eq.s32.totalorder %v878, 1
    %vm895 = vcmp.eq.s32.totalorder %v879, 1
    %vm896 = vcmp.eq.s32.totalorder %v880, 1
    %vm897 = vcmp.eq.s32.totalorder %v881, 1
    %vm898 = vcmp.eq.s32.totalorder %v882, 1
    %v899 = vsel %vm883, %v801, 0.0
    %v900 = vsel %vm884, %v800, 0.0
    %v901 = vsel %vm885, %v799, 0.0
    %v902 = vsel %vm886, %v798, 0.0
    %v903 = vsel %vm887, %v797, 0.0
    %v904 = vsel %vm888, %v796, 0.0
    %v905 = vsel %vm889, %v795, 0.0
    %v906 = vsel %vm890, %v794, 0.0
    %v907 = vsel %vm891, %v793, 0.0
    %v908 = vsel %vm892, %v792, 0.0
    %v909 = vsel %vm893, %v791, 0.0
    %v910 = vsel %vm894, %v790, 0.0
    %v911 = vsel %vm895, %v789, 0.0
    %v912 = vsel %vm896, %v788, 0.0
    %v913 = vsel %vm897, %v787, 0.0
    %v914 = vsel %vm898, %v802, 0.0
    %s915 = scalar_lea.vmem [#allocation5], 384
    %v916 = vld [vmem:[%s915] sm:$0xff]
    %v917 = vld [vmem:[%s915 + $0x8] sm:$0xff]
    %v918 = vld [vmem:[%s915 + $0x10] sm:$0xff]
    %v919 = vld [vmem:[%s915 + $0x18] sm:$0xff]
    %v920 = vld [vmem:[%s915 + $0x20] sm:$0xff]
    %v921 = vld [vmem:[%s915 + $0x28] sm:$0xff]
    %v922 = vld [vmem:[%s915 + $0x30] sm:$0xff]
    %v923 = vld [vmem:[%s915 + $0x38] sm:$0xff]
    %v924 = vld [vmem:[%s915 + $0x40] sm:$0xff]
    %v925 = vld [vmem:[%s915 + $0x48] sm:$0xff]
    %v926 = vld [vmem:[%s915 + $0x50] sm:$0xff]
    %v927 = vld [vmem:[%s915 + $0x58] sm:$0xff]
    %v928 = vld [vmem:[%s915 + $0x60] sm:$0xff]
    %v929 = vld [vmem:[%s915 + $0x68] sm:$0xff]
    %v930 = vld [vmem:[%s915 + $0x70] sm:$0xff]
    %v931 = vld [vmem:[%s915 + $0x78] sm:$0xff]
    %932 = vmatpush.msra.mxu0 %v931
    %933 = vmatpush.msra.mxu0 %v930
    %934 = vmatpush.msra.mxu0 %v929
    %935 = vmatpush.msra.mxu0 %v928
    %936 = vmatpush.msra.mxu0 %v927
    %937 = vmatpush.msra.mxu0 %v926
    %938 = vmatpush.msra.mxu0 %v925
    %939 = vmatpush.msra.mxu0 %v924
    %940 = vmatpush.msra.mxu0 %v923
    %941 = vmatpush.msra.mxu0 %v922
    %942 = vmatpush.msra.mxu0 %v921
    %943 = vmatpush.msra.mxu0 %v920
    %944 = vmatpush.msra.mxu0 %v919
    %945 = vmatpush.msra.mxu0 %v918
    %946 = vmatpush.msra.mxu0 %v917
    %947 = vmatpush.msra.mxu0 %v916
    %948 = vmatmul.f32.gmra.mxu0 %v899
    %v949 = vpop.f32.mrf.mxu0
    %v950 = vadd.f32 0.0, %v949
    %951 = vmatmul.f32.gmra.mxu0 %v900
    %v952 = vpop.f32.mrf.mxu0
    %v953 = vadd.f32 0.0, %v952
    %954 = vmatmul.f32.gmra.mxu0 %v901
    %v955 = vpop.f32.mrf.mxu0
    %v956 = vadd.f32 0.0, %v955
    %957 = vmatmul.f32.gmra.mxu0 %v902
    %v958 = vpop.f32.mrf.mxu0
    %v959 = vadd.f32 0.0, %v958
    %960 = vmatmul.f32.gmra.mxu0 %v903
    %v961 = vpop.f32.mrf.mxu0
    %v962 = vadd.f32 0.0, %v961
    %963 = vmatmul.f32.gmra.mxu0 %v904
    %v964 = vpop.f32.mrf.mxu0
    %v965 = vadd.f32 0.0, %v964
    %966 = vmatmul.f32.gmra.mxu0 %v905
    %v967 = vpop.f32.mrf.mxu0
    %v968 = vadd.f32 0.0, %v967
    %969 = vmatmul.f32.gmra.mxu0 %v906
    %v970 = vpop.f32.mrf.mxu0
    %v971 = vadd.f32 0.0, %v970
    %972 = vmatmul.f32.gmra.mxu0 %v907
    %v973 = vpop.f32.mrf.mxu0
    %v974 = vadd.f32 0.0, %v973
    %975 = vmatmul.f32.gmra.mxu0 %v908
    %v976 = vpop.f32.mrf.mxu0
    %v977 = vadd.f32 0.0, %v976
    %978 = vmatmul.f32.gmra.mxu0 %v909
    %v979 = vpop.f32.mrf.mxu0
    %v980 = vadd.f32 0.0, %v979
    %981 = vmatmul.f32.gmra.mxu0 %v910
    %v982 = vpop.f32.mrf.mxu0
    %v983 = vadd.f32 0.0, %v982
    %984 = vmatmul.f32.gmra.mxu0 %v911
    %v985 = vpop.f32.mrf.mxu0
    %v986 = vadd.f32 0.0, %v985
    %987 = vmatmul.f32.gmra.mxu0 %v912
    %v988 = vpop.f32.mrf.mxu0
    %v989 = vadd.f32 0.0, %v988
    %990 = vmatmul.f32.gmra.mxu0 %v913
    %v991 = vpop.f32.mrf.mxu0
    %v992 = vadd.f32 0.0, %v991
    %993 = vmatmul.f32.gmra.mxu0 %v914
    %v994 = vpop.f32.mrf.mxu0
    %v995 = vadd.f32 0.0, %v994
    %996 = vdwg.mxu0
    %v997 = vadd.f32 %v754, %v950
    %v998 = vadd.f32 %v755, %v953
    %v999 = vadd.f32 %v756, %v956
    %v1000 = vadd.f32 %v757, %v959
    %v1001 = vadd.f32 %v758, %v962
    %v1002 = vadd.f32 %v759, %v965
    %v1003 = vadd.f32 %v760, %v968
    %v1004 = vadd.f32 %v761, %v971
    %v1005 = vadd.f32 %v762, %v974
    %v1006 = vadd.f32 %v763, %v977
    %v1007 = vadd.f32 %v764, %v980
    %v1008 = vadd.f32 %v765, %v983
    %v1009 = vadd.f32 %v766, %v986
    %v1010 = vadd.f32 %v767, %v989
    %v1011 = vadd.f32 %v768, %v992
    %v1012 = vadd.f32 %v769, %v995
    %v1013 = vrot.slane %v74, 2
    %v1014 = vrot.slane %v75, 2
    %v1015 = vrot.slane %v76, 2
    %v1016 = vrot.slane %v77, 2
    %v1017 = vrot.slane %v78, 2
    %v1018 = vrot.slane %v79, 2
    %v1019 = vrot.slane %v80, 2
    %v1020 = vrot.slane %v81, 2
    %v1021 = vrot.slane %v82, 2
    %v1022 = vrot.slane %v83, 2
    %v1023 = vrot.slane %v84, 2
    %v1024 = vrot.slane %v85, 2
    %v1025 = vrot.slane %v86, 2
    %v1026 = vrot.slane %v87, 2
    %v1027 = vrot.slane %v88, 2
    %v1028 = vrot.slane %v89, 2
    %vm1029 = vcmp.lt.s32.totalorder %v91, 6
    %v1030 = vsel %vm1029, %v1027, %v1028
    %v1031 = vsel %vm1029, %v1026, %v1027
    %v1032 = vsel %vm1029, %v1025, %v1026
    %v1033 = vsel %vm1029, %v1024, %v1025
    %v1034 = vsel %vm1029, %v1023, %v1024
    %v1035 = vsel %vm1029, %v1022, %v1023
    %v1036 = vsel %vm1029, %v1021, %v1022
    %v1037 = vsel %vm1029, %v1020, %v1021
    %v1038 = vsel %vm1029, %v1019, %v1020
    %v1039 = vsel %vm1029, %v1018, %v1019
    %v1040 = vsel %vm1029, %v1017, %v1018
    %v1041 = vsel %vm1029, %v1016, %v1017
    %v1042 = vsel %vm1029, %v1015, %v1016
    %v1043 = vsel %vm1029, %v1014, %v1015
    %v1044 = vsel %vm1029, %v1013, %v1014
    %v1045 = vsel %vm1029, %v1028, %v1013
    %v1046 = vadd.s32 %v113, 2
    %v1047 = vadd.s32 %v120, 2
    %v1048 = vadd.s32 %v127, 2
    %v1049 = vadd.s32 %v134, 2
    %v1050 = vadd.s32 %v141, 2
    %v1051 = vadd.s32 %v148, 2
    %v1052 = vadd.s32 %v155, 2
    %v1053 = vadd.s32 %v162, 2
    %v1054 = vadd.s32 %v169, 2
    %v1055 = vadd.s32 %v176, 2
    %v1056 = vadd.s32 %v183, 2
    %v1057 = vadd.s32 %v190, 2
    %v1058 = vadd.s32 %v197, 2
    %v1059 = vadd.s32 %v204, 2
    %v1060 = vadd.s32 %v211, 2
    %v1061 = vadd.s32 %v218, 2
    %vm1062 = vcmp.ge.s32.totalorder %v1046, 0
    %vm1063 = vcmp.ge.s32.totalorder %v1047, 0
    %vm1064 = vcmp.ge.s32.totalorder %v1048, 0
    %vm1065 = vcmp.ge.s32.totalorder %v1049, 0
    %vm1066 = vcmp.ge.s32.totalorder %v1050, 0
    %vm1067 = vcmp.ge.s32.totalorder %v1051, 0
    %vm1068 = vcmp.ge.s32.totalorder %v1052, 0
    %vm1069 = vcmp.ge.s32.totalorder %v1053, 0
    %vm1070 = vcmp.ge.s32.totalorder %v1054, 0
    %vm1071 = vcmp.ge.s32.totalorder %v1055, 0
    %vm1072 = vcmp.ge.s32.totalorder %v1056, 0
    %vm1073 = vcmp.ge.s32.totalorder %v1057, 0
    %vm1074 = vcmp.ge.s32.totalorder %v1058, 0
    %vm1075 = vcmp.ge.s32.totalorder %v1059, 0
    %vm1076 = vcmp.ge.s32.totalorder %v1060, 0
    %vm1077 = vcmp.ge.s32.totalorder %v1061, 0
    %vm1078 = vcmp.lt.s32.totalorder %v1046, 64
    %vm1079 = vcmp.lt.s32.totalorder %v1047, 64
    %vm1080 = vcmp.lt.s32.totalorder %v1048, 64
    %vm1081 = vcmp.lt.s32.totalorder %v1049, 64
    %vm1082 = vcmp.lt.s32.totalorder %v1050, 64
    %vm1083 = vcmp.lt.s32.totalorder %v1051, 64
    %vm1084 = vcmp.lt.s32.totalorder %v1052, 64
    %vm1085 = vcmp.lt.s32.totalorder %v1053, 64
    %vm1086 = vcmp.lt.s32.totalorder %v1054, 64
    %vm1087 = vcmp.lt.s32.totalorder %v1055, 64
    %vm1088 = vcmp.lt.s32.totalorder %v1056, 64
    %vm1089 = vcmp.lt.s32.totalorder %v1057, 64
    %vm1090 = vcmp.lt.s32.totalorder %v1058, 64
    %vm1091 = vcmp.lt.s32.totalorder %v1059, 64
    %vm1092 = vcmp.lt.s32.totalorder %v1060, 64
    %vm1093 = vcmp.lt.s32.totalorder %v1061, 64
    %vm1094 = vmand %vm1062, %vm1078
    %vm1095 = vmand %vm1063, %vm1079
    %vm1096 = vmand %vm1064, %vm1080
    %vm1097 = vmand %vm1065, %vm1081
    %vm1098 = vmand %vm1066, %vm1082
    %vm1099 = vmand %vm1067, %vm1083
    %vm1100 = vmand %vm1068, %vm1084
    %vm1101 = vmand %vm1069, %vm1085
    %vm1102 = vmand %vm1070, %vm1086
    %vm1103 = vmand %vm1071, %vm1087
    %vm1104 = vmand %vm1072, %vm1088
    %vm1105 = vmand %vm1073, %vm1089
    %vm1106 = vmand %vm1074, %vm1090
    %vm1107 = vmand %vm1075, %vm1091
    %vm1108 = vmand %vm1076, %vm1092
    %vm1109 = vmand %vm1077, %vm1093
    %v1110 = vsel %vm1094, 1, 0
    %v1111 = vsel %vm1095, 1, 0
    %v1112 = vsel %vm1096, 1, 0
    %v1113 = vsel %vm1097, 1, 0
    %v1114 = vsel %vm1098, 1, 0
    %v1115 = vsel %vm1099, 1, 0
    %v1116 = vsel %vm1100, 1, 0
    %v1117 = vsel %vm1101, 1, 0
    %v1118 = vsel %vm1102, 1, 0
    %v1119 = vsel %vm1103, 1, 0
    %v1120 = vsel %vm1104, 1, 0
    %v1121 = vsel %vm1105, 1, 0
    %v1122 = vsel %vm1106, 1, 0
    %v1123 = vsel %vm1107, 1, 0
    %v1124 = vsel %vm1108, 1, 0
    %v1125 = vsel %vm1109, 1, 0
    %vm1126 = vcmp.eq.s32.totalorder %v1110, 1
    %vm1127 = vcmp.eq.s32.totalorder %v1111, 1
    %vm1128 = vcmp.eq.s32.totalorder %v1112, 1
    %vm1129 = vcmp.eq.s32.totalorder %v1113, 1
    %vm1130 = vcmp.eq.s32.totalorder %v1114, 1
    %vm1131 = vcmp.eq.s32.totalorder %v1115, 1
    %vm1132 = vcmp.eq.s32.totalorder %v1116, 1
    %vm1133 = vcmp.eq.s32.totalorder %v1117, 1
    %vm1134 = vcmp.eq.s32.totalorder %v1118, 1
    %vm1135 = vcmp.eq.s32.totalorder %v1119, 1
    %vm1136 = vcmp.eq.s32.totalorder %v1120, 1
    %vm1137 = vcmp.eq.s32.totalorder %v1121, 1
    %vm1138 = vcmp.eq.s32.totalorder %v1122, 1
    %vm1139 = vcmp.eq.s32.totalorder %v1123, 1
    %vm1140 = vcmp.eq.s32.totalorder %v1124, 1
    %vm1141 = vcmp.eq.s32.totalorder %v1125, 1
    %v1142 = vsel %vm1126, %v1044, 0.0
    %v1143 = vsel %vm1127, %v1043, 0.0
    %v1144 = vsel %vm1128, %v1042, 0.0
    %v1145 = vsel %vm1129, %v1041, 0.0
    %v1146 = vsel %vm1130, %v1040, 0.0
    %v1147 = vsel %vm1131, %v1039, 0.0
    %v1148 = vsel %vm1132, %v1038, 0.0
    %v1149 = vsel %vm1133, %v1037, 0.0
    %v1150 = vsel %vm1134, %v1036, 0.0
    %v1151 = vsel %vm1135, %v1035, 0.0
    %v1152 = vsel %vm1136, %v1034, 0.0
    %v1153 = vsel %vm1137, %v1033, 0.0
    %v1154 = vsel %vm1138, %v1032, 0.0
    %v1155 = vsel %vm1139, %v1031, 0.0
    %v1156 = vsel %vm1140, %v1030, 0.0
    %v1157 = vsel %vm1141, %v1045, 0.0
    %s1158 = scalar_lea.vmem [#allocation5], 512
    %v1159 = vld [vmem:[%s1158] sm:$0xff]
    %v1160 = vld [vmem:[%s1158 + $0x8] sm:$0xff]
    %v1161 = vld [vmem:[%s1158 + $0x10] sm:$0xff]
    %v1162 = vld [vmem:[%s1158 + $0x18] sm:$0xff]
    %v1163 = vld [vmem:[%s1158 + $0x20] sm:$0xff]
    %v1164 = vld [vmem:[%s1158 + $0x28] sm:$0xff]
    %v1165 = vld [vmem:[%s1158 + $0x30] sm:$0xff]
    %v1166 = vld [vmem:[%s1158 + $0x38] sm:$0xff]
    %v1167 = vld [vmem:[%s1158 + $0x40] sm:$0xff]
    %v1168 = vld [vmem:[%s1158 + $0x48] sm:$0xff]
    %v1169 = vld [vmem:[%s1158 + $0x50] sm:$0xff]
    %v1170 = vld [vmem:[%s1158 + $0x58] sm:$0xff]
    %v1171 = vld [vmem:[%s1158 + $0x60] sm:$0xff]
    %v1172 = vld [vmem:[%s1158 + $0x68] sm:$0xff]
    %v1173 = vld [vmem:[%s1158 + $0x70] sm:$0xff]
    %v1174 = vld [vmem:[%s1158 + $0x78] sm:$0xff]
    %1175 = vmatpush.msra.mxu0 %v1174
    %1176 = vmatpush.msra.mxu0 %v1173
    %1177 = vmatpush.msra.mxu0 %v1172
    %1178 = vmatpush.msra.mxu0 %v1171
    %1179 = vmatpush.msra.mxu0 %v1170
    %1180 = vmatpush.msra.mxu0 %v1169
    %1181 = vmatpush.msra.mxu0 %v1168
    %1182 = vmatpush.msra.mxu0 %v1167
    %1183 = vmatpush.msra.mxu0 %v1166
    %1184 = vmatpush.msra.mxu0 %v1165
    %1185 = vmatpush.msra.mxu0 %v1164
    %1186 = vmatpush.msra.mxu0 %v1163
    %1187 = vmatpush.msra.mxu0 %v1162
    %1188 = vmatpush.msra.mxu0 %v1161
    %1189 = vmatpush.msra.mxu0 %v1160
    %1190 = vmatpush.msra.mxu0 %v1159
    %1191 = vmatmul.f32.gmra.mxu0 %v1142
    %v1192 = vpop.f32.mrf.mxu0
    %v1193 = vadd.f32 0.0, %v1192
    %1194 = vmatmul.f32.gmra.mxu0 %v1143
    %v1195 = vpop.f32.mrf.mxu0
    %v1196 = vadd.f32 0.0, %v1195
    %1197 = vmatmul.f32.gmra.mxu0 %v1144
    %v1198 = vpop.f32.mrf.mxu0
    %v1199 = vadd.f32 0.0, %v1198
    %1200 = vmatmul.f32.gmra.mxu0 %v1145
    %v1201 = vpop.f32.mrf.mxu0
    %v1202 = vadd.f32 0.0, %v1201
    %1203 = vmatmul.f32.gmra.mxu0 %v1146
    %v1204 = vpop.f32.mrf.mxu0
    %v1205 = vadd.f32 0.0, %v1204
    %1206 = vmatmul.f32.gmra.mxu0 %v1147
    %v1207 = vpop.f32.mrf.mxu0
    %v1208 = vadd.f32 0.0, %v1207
    %1209 = vmatmul.f32.gmra.mxu0 %v1148
    %v1210 = vpop.f32.mrf.mxu0
    %v1211 = vadd.f32 0.0, %v1210
    %1212 = vmatmul.f32.gmra.mxu0 %v1149
    %v1213 = vpop.f32.mrf.mxu0
    %v1214 = vadd.f32 0.0, %v1213
    %1215 = vmatmul.f32.gmra.mxu0 %v1150
    %v1216 = vpop.f32.mrf.mxu0
    %v1217 = vadd.f32 0.0, %v1216
    %1218 = vmatmul.f32.gmra.mxu0 %v1151
    %v1219 = vpop.f32.mrf.mxu0
    %v1220 = vadd.f32 0.0, %v1219
    %1221 = vmatmul.f32.gmra.mxu0 %v1152
    %v1222 = vpop.f32.mrf.mxu0
    %v1223 = vadd.f32 0.0, %v1222
    %1224 = vmatmul.f32.gmra.mxu0 %v1153
    %v1225 = vpop.f32.mrf.mxu0
    %v1226 = vadd.f32 0.0, %v1225
    %1227 = vmatmul.f32.gmra.mxu0 %v1154
    %v1228 = vpop.f32.mrf.mxu0
    %v1229 = vadd.f32 0.0, %v1228
    %1230 = vmatmul.f32.gmra.mxu0 %v1155
    %v1231 = vpop.f32.mrf.mxu0
    %v1232 = vadd.f32 0.0, %v1231
    %1233 = vmatmul.f32.gmra.mxu0 %v1156
    %v1234 = vpop.f32.mrf.mxu0
    %v1235 = vadd.f32 0.0, %v1234
    %1236 = vmatmul.f32.gmra.mxu0 %v1157
    %v1237 = vpop.f32.mrf.mxu0
    %v1238 = vadd.f32 0.0, %v1237
    %1239 = vdwg.mxu0
    %v1240 = vadd.f32 %v997, %v1193
    %v1241 = vadd.f32 %v998, %v1196
    %v1242 = vadd.f32 %v999, %v1199
    %v1243 = vadd.f32 %v1000, %v1202
    %v1244 = vadd.f32 %v1001, %v1205
    %v1245 = vadd.f32 %v1002, %v1208
    %v1246 = vadd.f32 %v1003, %v1211
    %v1247 = vadd.f32 %v1004, %v1214
    %v1248 = vadd.f32 %v1005, %v1217
    %v1249 = vadd.f32 %v1006, %v1220
    %v1250 = vadd.f32 %v1007, %v1223
    %v1251 = vadd.f32 %v1008, %v1226
    %v1252 = vadd.f32 %v1009, %v1229
    %v1253 = vadd.f32 %v1010, %v1232
    %v1254 = vadd.f32 %v1011, %v1235
    %v1255 = vadd.f32 %v1012, %v1238
    %v1256 = vadd.f32 %v1240, %v1241
    %v1257 = vadd.f32 %v1256, %v1242
    %v1258 = vadd.f32 %v1257, %v1243
    %v1259 = vadd.f32 %v1258, %v1244
    %v1260 = vadd.f32 %v1259, %v1245
    %v1261 = vadd.f32 %v1260, %v1246
    %v1262 = vadd.f32 %v1261, %v1247
    %v1263 = vadd.f32 %v1262, %v1248
    %v1264 = vadd.f32 %v1263, %v1249
    %v1265 = vadd.f32 %v1264, %v1250
    %v1266 = vadd.f32 %v1265, %v1251
    %v1267 = vadd.f32 %v1266, %v1252
    %v1268 = vadd.f32 %v1267, %v1253
    %v1269 = vadd.f32 %v1268, %v1254
    %v1270 = vadd.f32 %v1269, %v1255
    %v1271 = vrot.slane %v1270, 4
    %v1272 = vadd.f32 %v1270, %v1271
    %v1273 = vrot.slane %v1272, 2
    %v1274 = vadd.f32 %v1272, %v1273
    %v1275 = vrot.slane %v1274, 1
    %v1276 = vadd.f32 %v1274, %v1275
    %v1277 = vmul.f32 %v1276, 0.0078125
    %v1278 = vsub.f32 %v1240, %v1277
    %v1279 = vsub.f32 %v1241, %v1277
    %v1280 = vsub.f32 %v1242, %v1277
    %v1281 = vsub.f32 %v1243, %v1277
    %v1282 = vsub.f32 %v1244, %v1277
    %v1283 = vsub.f32 %v1245, %v1277
    %v1284 = vsub.f32 %v1246, %v1277
    %v1285 = vsub.f32 %v1247, %v1277
    %v1286 = vsub.f32 %v1248, %v1277
    %v1287 = vsub.f32 %v1249, %v1277
    %v1288 = vsub.f32 %v1250, %v1277
    %v1289 = vsub.f32 %v1251, %v1277
    %v1290 = vsub.f32 %v1252, %v1277
    %v1291 = vsub.f32 %v1253, %v1277
    %v1292 = vsub.f32 %v1254, %v1277
    %v1293 = vsub.f32 %v1255, %v1277
    %v1294 = vmul.f32 %v1278, %v1278
    %v1295 = vmul.f32 %v1279, %v1279
    %v1296 = vmul.f32 %v1280, %v1280
    %v1297 = vmul.f32 %v1281, %v1281
    %v1298 = vmul.f32 %v1282, %v1282
    %v1299 = vmul.f32 %v1283, %v1283
    %v1300 = vmul.f32 %v1284, %v1284
    %v1301 = vmul.f32 %v1285, %v1285
    %v1302 = vmul.f32 %v1286, %v1286
    %v1303 = vmul.f32 %v1287, %v1287
    %v1304 = vmul.f32 %v1288, %v1288
    %v1305 = vmul.f32 %v1289, %v1289
    %v1306 = vmul.f32 %v1290, %v1290
    %v1307 = vmul.f32 %v1291, %v1291
    %v1308 = vmul.f32 %v1292, %v1292
    %v1309 = vmul.f32 %v1293, %v1293
    %v1310 = vadd.f32 %v1294, %v1295
    %v1311 = vadd.f32 %v1310, %v1296
    %v1312 = vadd.f32 %v1311, %v1297
    %v1313 = vadd.f32 %v1312, %v1298
    %v1314 = vadd.f32 %v1313, %v1299
    %v1315 = vadd.f32 %v1314, %v1300
    %v1316 = vadd.f32 %v1315, %v1301
    %v1317 = vadd.f32 %v1316, %v1302
    %v1318 = vadd.f32 %v1317, %v1303
    %v1319 = vadd.f32 %v1318, %v1304
    %v1320 = vadd.f32 %v1319, %v1305
    %v1321 = vadd.f32 %v1320, %v1306
    %v1322 = vadd.f32 %v1321, %v1307
    %v1323 = vadd.f32 %v1322, %v1308
    %v1324 = vadd.f32 %v1323, %v1309
    %v1325 = vrot.slane %v1324, 4
    %v1326 = vadd.f32 %v1324, %v1325
    %v1327 = vrot.slane %v1326, 2
    %v1328 = vadd.f32 %v1326, %v1327
    %v1329 = vrot.slane %v1328, 1
    %v1330 = vadd.f32 %v1328, %v1329
    %v1331 = vmul.f32 %v1330, 0.0078125
    %v1332 = vld [vmem:[%s3] sm:$0x1]
    %v1333 = vadd.f32 %v1331, 1e-05
    %v1334 = vrsqrt.pop %v1333
    %v1335 = vmul.f32 %v1334, %v1333
    %v1336 = vmul.f32 %v1335, %v1334
    %v1337 = vmul.f32 0.5, %v1336
    %v1338 = vsub.f32 1.5, %v1337
    %v1339 = vmul.f32 %v1334, %v1338
    %vm1340 = vweird.f32 %v1333
    %vm1341 = vweird.f32 %v1334
    %vm1342 = vmor %vm1340, %vm1341
    %v1343 = vsel %vm1342, %v1334, %v1339
    %v1344 = vmul.f32 %v1332, %v1343
    %v1346 = vperm.slane %v1344, 0
    %v1348 = vmul.f32 %v1278, %v1346
    %v1349 = vmul.f32 %v1279, %v1346
    %v1350 = vmul.f32 %v1280, %v1346
    %v1351 = vmul.f32 %v1281, %v1346
    %v1352 = vmul.f32 %v1282, %v1346
    %v1353 = vmul.f32 %v1283, %v1346
    %v1354 = vmul.f32 %v1284, %v1346
    %v1355 = vmul.f32 %v1285, %v1346
    %v1356 = vmul.f32 %v1286, %v1346
    %v1357 = vmul.f32 %v1287, %v1346
    %v1358 = vmul.f32 %v1288, %v1346
    %v1359 = vmul.f32 %v1289, %v1346
    %v1360 = vmul.f32 %v1290, %v1346
    %v1361 = vmul.f32 %v1291, %v1346
    %v1362 = vmul.f32 %v1292, %v1346
    %v1363 = vmul.f32 %v1293, %v1346
    %v1364 = vld [vmem:[%s4] sm:$0x1]
    %v1366 = vperm.slane %v1364, 0
    %v1368 = vadd.f32 %v1348, %v1366
    %v1369 = vadd.f32 %v1349, %v1366
    %v1370 = vadd.f32 %v1350, %v1366
    %v1371 = vadd.f32 %v1351, %v1366
    %v1372 = vadd.f32 %v1352, %v1366
    %v1373 = vadd.f32 %v1353, %v1366
    %v1374 = vadd.f32 %v1354, %v1366
    %v1375 = vadd.f32 %v1355, %v1366
    %v1376 = vadd.f32 %v1356, %v1366
    %v1377 = vadd.f32 %v1357, %v1366
    %v1378 = vadd.f32 %v1358, %v1366
    %v1379 = vadd.f32 %v1359, %v1366
    %v1380 = vadd.f32 %v1360, %v1366
    %v1381 = vadd.f32 %v1361, %v1366
    %v1382 = vadd.f32 %v1362, %v1366
    %v1383 = vadd.f32 %v1363, %v1366
    %v1384 = vmax.f32 %v1368, 0.0
    %v1385 = vmax.f32 %v1369, 0.0
    %v1386 = vmax.f32 %v1370, 0.0
    %v1387 = vmax.f32 %v1371, 0.0
    %v1388 = vmax.f32 %v1372, 0.0
    %v1389 = vmax.f32 %v1373, 0.0
    %v1390 = vmax.f32 %v1374, 0.0
    %v1391 = vmax.f32 %v1375, 0.0
    %v1392 = vmax.f32 %v1376, 0.0
    %v1393 = vmax.f32 %v1377, 0.0
    %v1394 = vmax.f32 %v1378, 0.0
    %v1395 = vmax.f32 %v1379, 0.0
    %v1396 = vmax.f32 %v1380, 0.0
    %v1397 = vmax.f32 %v1381, 0.0
    %v1398 = vmax.f32 %v1382, 0.0
    %v1399 = vmax.f32 %v1383, 0.0
    %v1400 = vrot.slane %v1384, 6
    %v1401 = vrot.slane %v1385, 6
    %v1402 = vrot.slane %v1386, 6
    %v1403 = vrot.slane %v1387, 6
    %v1404 = vrot.slane %v1388, 6
    %v1405 = vrot.slane %v1389, 6
    %v1406 = vrot.slane %v1390, 6
    %v1407 = vrot.slane %v1391, 6
    %v1408 = vrot.slane %v1392, 6
    %v1409 = vrot.slane %v1393, 6
    %v1410 = vrot.slane %v1394, 6
    %v1411 = vrot.slane %v1395, 6
    %v1412 = vrot.slane %v1396, 6
    %v1413 = vrot.slane %v1397, 6
    %v1414 = vrot.slane %v1398, 6
    %v1415 = vrot.slane %v1399, 6
    %v1416 = vsel %vm235, %v1414, %v1415
    %v1417 = vsel %vm235, %v1413, %v1414
    %v1418 = vsel %vm235, %v1412, %v1413
    %v1419 = vsel %vm235, %v1411, %v1412
    %v1420 = vsel %vm235, %v1410, %v1411
    %v1421 = vsel %vm235, %v1409, %v1410
    %v1422 = vsel %vm235, %v1408, %v1409
    %v1423 = vsel %vm235, %v1407, %v1408
    %v1424 = vsel %vm235, %v1406, %v1407
    %v1425 = vsel %vm235, %v1405, %v1406
    %v1426 = vsel %vm235, %v1404, %v1405
    %v1427 = vsel %vm235, %v1403, %v1404
    %v1428 = vsel %vm235, %v1402, %v1403
    %v1429 = vsel %vm235, %v1401, %v1402
    %v1430 = vsel %vm235, %v1400, %v1401
    %v1431 = vsel %vm235, %v1415, %v1400
    %v1432 = vsel %vm332, %v1431, 0.0
    %v1433 = vsel %vm333, %v1430, 0.0
    %v1434 = vsel %vm334, %v1429, 0.0
    %v1435 = vsel %vm335, %v1428, 0.0
    %v1436 = vsel %vm336, %v1427, 0.0
    %v1437 = vsel %vm337, %v1426, 0.0
    %v1438 = vsel %vm338, %v1425, 0.0
    %v1439 = vsel %vm339, %v1424, 0.0
    %v1440 = vsel %vm340, %v1423, 0.0
    %v1441 = vsel %vm341, %v1422, 0.0
    %v1442 = vsel %vm342, %v1421, 0.0
    %v1443 = vsel %vm343, %v1420, 0.0
    %v1444 = vsel %vm344, %v1419, 0.0
    %v1445 = vsel %vm345, %v1418, 0.0
    %v1446 = vsel %vm346, %v1417, 0.0
    %v1447 = vsel %vm347, %v1416, 0.0
    %v1448 = vld [vmem:[#allocation7] sm:$0xff]
    %v1449 = vld [vmem:[#allocation7 + $0x8] sm:$0xff]
    %v1450 = vld [vmem:[#allocation7 + $0x10] sm:$0xff]
    %v1451 = vld [vmem:[#allocation7 + $0x18] sm:$0xff]
    %v1452 = vld [vmem:[#allocation7 + $0x20] sm:$0xff]
    %v1453 = vld [vmem:[#allocation7 + $0x28] sm:$0xff]
    %v1454 = vld [vmem:[#allocation7 + $0x30] sm:$0xff]
    %v1455 = vld [vmem:[#allocation7 + $0x38] sm:$0xff]
    %v1456 = vld [vmem:[#allocation7 + $0x40] sm:$0xff]
    %v1457 = vld [vmem:[#allocation7 + $0x48] sm:$0xff]
    %v1458 = vld [vmem:[#allocation7 + $0x50] sm:$0xff]
    %v1459 = vld [vmem:[#allocation7 + $0x58] sm:$0xff]
    %v1460 = vld [vmem:[#allocation7 + $0x60] sm:$0xff]
    %v1461 = vld [vmem:[#allocation7 + $0x68] sm:$0xff]
    %v1462 = vld [vmem:[#allocation7 + $0x70] sm:$0xff]
    %v1463 = vld [vmem:[#allocation7 + $0x78] sm:$0xff]
    %v1464 = vrot.slane %v1384, 7
    %v1465 = vrot.slane %v1385, 7
    %v1466 = vrot.slane %v1386, 7
    %v1467 = vrot.slane %v1387, 7
    %v1468 = vrot.slane %v1388, 7
    %v1469 = vrot.slane %v1389, 7
    %v1470 = vrot.slane %v1390, 7
    %v1471 = vrot.slane %v1391, 7
    %v1472 = vrot.slane %v1392, 7
    %v1473 = vrot.slane %v1393, 7
    %v1474 = vrot.slane %v1394, 7
    %v1475 = vrot.slane %v1395, 7
    %v1476 = vrot.slane %v1396, 7
    %v1477 = vrot.slane %v1397, 7
    %v1478 = vrot.slane %v1398, 7
    %v1479 = vrot.slane %v1399, 7
    %v1480 = vsel %vm396, %v1478, %v1479
    %v1481 = vsel %vm396, %v1477, %v1478
    %v1482 = vsel %vm396, %v1476, %v1477
    %v1483 = vsel %vm396, %v1475, %v1476
    %v1484 = vsel %vm396, %v1474, %v1475
    %v1485 = vsel %vm396, %v1473, %v1474
    %v1486 = vsel %vm396, %v1472, %v1473
    %v1487 = vsel %vm396, %v1471, %v1472
    %v1488 = vsel %vm396, %v1470, %v1471
    %v1489 = vsel %vm396, %v1469, %v1470
    %v1490 = vsel %vm396, %v1468, %v1469
    %v1491 = vsel %vm396, %v1467, %v1468
    %v1492 = vsel %vm396, %v1466, %v1467
    %v1493 = vsel %vm396, %v1465, %v1466
    %v1494 = vsel %vm396, %v1464, %v1465
    %v1495 = vsel %vm396, %v1479, %v1464
    %v1496 = vsel %vm493, %v1495, 0.0
    %v1497 = vsel %vm494, %v1494, 0.0
    %v1498 = vsel %vm495, %v1493, 0.0
    %v1499 = vsel %vm496, %v1492, 0.0
    %v1500 = vsel %vm497, %v1491, 0.0
    %v1501 = vsel %vm498, %v1490, 0.0
    %v1502 = vsel %vm499, %v1489, 0.0
    %v1503 = vsel %vm500, %v1488, 0.0
    %v1504 = vsel %vm501, %v1487, 0.0
    %v1505 = vsel %vm502, %v1486, 0.0
    %v1506 = vsel %vm503, %v1485, 0.0
    %v1507 = vsel %vm504, %v1484, 0.0
    %v1508 = vsel %vm505, %v1483, 0.0
    %v1509 = vsel %vm506, %v1482, 0.0
    %v1510 = vsel %vm507, %v1481, 0.0
    %v1511 = vsel %vm508, %v1480, 0.0
    %s1512 = scalar_lea.vmem [#allocation7], 128
    %v1513 = vld [vmem:[%s1512] sm:$0xff]
    %v1514 = vld [vmem:[%s1512 + $0x8] sm:$0xff]
    %v1515 = vld [vmem:[%s1512 + $0x10] sm:$0xff]
    %v1516 = vld [vmem:[%s1512 + $0x18] sm:$0xff]
    %v1517 = vld [vmem:[%s1512 + $0x20] sm:$0xff]
    %v1518 = vld [vmem:[%s1512 + $0x28] sm:$0xff]
    %v1519 = vld [vmem:[%s1512 + $0x30] sm:$0xff]
    %v1520 = vld [vmem:[%s1512 + $0x38] sm:$0xff]
    %v1521 = vld [vmem:[%s1512 + $0x40] sm:$0xff]
    %v1522 = vld [vmem:[%s1512 + $0x48] sm:$0xff]
    %v1523 = vld [vmem:[%s1512 + $0x50] sm:$0xff]
    %v1524 = vld [vmem:[%s1512 + $0x58] sm:$0xff]
    %v1525 = vld [vmem:[%s1512 + $0x60] sm:$0xff]
    %v1526 = vld [vmem:[%s1512 + $0x68] sm:$0xff]
    %v1527 = vld [vmem:[%s1512 + $0x70] sm:$0xff]
    %v1528 = vld [vmem:[%s1512 + $0x78] sm:$0xff]
    %1529 = vmatpush.msra.mxu0 %v1528
    %1530 = vmatpush.msra.mxu0 %v1527
    %1531 = vmatpush.msra.mxu0 %v1526
    %1532 = vmatpush.msra.mxu0 %v1525
    %1533 = vmatpush.msra.mxu0 %v1524
    %1534 = vmatpush.msra.mxu0 %v1523
    %1535 = vmatpush.msra.mxu0 %v1522
    %1536 = vmatpush.msra.mxu0 %v1521
    %1537 = vmatpush.msra.mxu0 %v1520
    %1538 = vmatpush.msra.mxu0 %v1519
    %1539 = vmatpush.msra.mxu0 %v1518
    %1540 = vmatpush.msra.mxu0 %v1517
    %1541 = vmatpush.msra.mxu0 %v1516
    %1542 = vmatpush.msra.mxu0 %v1515
    %1543 = vmatpush.msra.mxu0 %v1514
    %1544 = vmatpush.msra.mxu0 %v1513
    %1545 = vmatmul.f32.gmra.mxu0 %v1496
    %v1546 = vpop.f32.mrf.mxu0
    %v1547 = vadd.f32 0.0, %v1546
    %1548 = vmatmul.f32.gmra.mxu0 %v1497
    %v1549 = vpop.f32.mrf.mxu0
    %v1550 = vadd.f32 0.0, %v1549
    %1551 = vmatmul.f32.gmra.mxu0 %v1498
    %v1552 = vpop.f32.mrf.mxu0
    %v1553 = vadd.f32 0.0, %v1552
    %1554 = vmatmul.f32.gmra.mxu0 %v1499
    %v1555 = vpop.f32.mrf.mxu0
    %v1556 = vadd.f32 0.0, %v1555
    %1557 = vmatmul.f32.gmra.mxu0 %v1500
    %v1558 = vpop.f32.mrf.mxu0
    %v1559 = vadd.f32 0.0, %v1558
    %1560 = vmatmul.f32.gmra.mxu0 %v1501
    %v1561 = vpop.f32.mrf.mxu0
    %v1562 = vadd.f32 0.0, %v1561
    %1563 = vmatmul.f32.gmra.mxu0 %v1502
    %v1564 = vpop.f32.mrf.mxu0
    %v1565 = vadd.f32 0.0, %v1564
    %1566 = vmatmul.f32.gmra.mxu0 %v1503
    %v1567 = vpop.f32.mrf.mxu0
    %v1568 = vadd.f32 0.0, %v1567
    %1569 = vmatmul.f32.gmra.mxu0 %v1504
    %v1570 = vpop.f32.mrf.mxu0
    %v1571 = vadd.f32 0.0, %v1570
    %1572 = vmatmul.f32.gmra.mxu0 %v1505
    %v1573 = vpop.f32.mrf.mxu0
    %v1574 = vadd.f32 0.0, %v1573
    %1575 = vmatmul.f32.gmra.mxu0 %v1506
    %v1576 = vpop.f32.mrf.mxu0
    %v1577 = vadd.f32 0.0, %v1576
    %1578 = vmatmul.f32.gmra.mxu0 %v1507
    %v1579 = vpop.f32.mrf.mxu0
    %v1580 = vadd.f32 0.0, %v1579
    %1581 = vmatmul.f32.gmra.mxu0 %v1508
    %v1582 = vpop.f32.mrf.mxu0
    %v1583 = vadd.f32 0.0, %v1582
    %1584 = vmatmul.f32.gmra.mxu0 %v1509
    %v1585 = vpop.f32.mrf.mxu0
    %v1586 = vadd.f32 0.0, %v1585
    %1587 = vmatmul.f32.gmra.mxu0 %v1510
    %v1588 = vpop.f32.mrf.mxu0
    %v1589 = vadd.f32 0.0, %v1588
    %1590 = vmatmul.f32.gmra.mxu0 %v1511
    %v1591 = vpop.f32.mrf.mxu0
    %v1592 = vadd.f32 0.0, %v1591
    %1593 = vdwg.mxu0
    %1594 = vmatpush.msra.mxu0 %v1463
    %1595 = vmatpush.msra.mxu0 %v1462
    %1596 = vmatpush.msra.mxu0 %v1461
    %1597 = vmatpush.msra.mxu0 %v1460
    %1598 = vmatpush.msra.mxu0 %v1459
    %1599 = vmatpush.msra.mxu0 %v1458
    %1600 = vmatpush.msra.mxu0 %v1457
    %1601 = vmatpush.msra.mxu0 %v1456
    %1602 = vmatpush.msra.mxu0 %v1455
    %1603 = vmatpush.msra.mxu0 %v1454
    %1604 = vmatpush.msra.mxu0 %v1453
    %1605 = vmatpush.msra.mxu0 %v1452
    %1606 = vmatpush.msra.mxu0 %v1451
    %1607 = vmatpush.msra.mxu0 %v1450
    %1608 = vmatpush.msra.mxu0 %v1449
    %1609 = vmatpush.msra.mxu0 %v1448
    %1610 = vmatmul.f32.gmra.mxu0 %v1432
    %v1611 = vpop.f32.mrf.mxu0
    %v1612 = vadd.f32 %v1547, %v1611
    %1613 = vmatmul.f32.gmra.mxu0 %v1433
    %v1614 = vpop.f32.mrf.mxu0
    %v1615 = vadd.f32 %v1550, %v1614
    %1616 = vmatmul.f32.gmra.mxu0 %v1434
    %v1617 = vpop.f32.mrf.mxu0
    %v1618 = vadd.f32 %v1553, %v1617
    %1619 = vmatmul.f32.gmra.mxu0 %v1435
    %v1620 = vpop.f32.mrf.mxu0
    %v1621 = vadd.f32 %v1556, %v1620
    %1622 = vmatmul.f32.gmra.mxu0 %v1436
    %v1623 = vpop.f32.mrf.mxu0
    %v1624 = vadd.f32 %v1559, %v1623
    %1625 = vmatmul.f32.gmra.mxu0 %v1437
    %v1626 = vpop.f32.mrf.mxu0
    %v1627 = vadd.f32 %v1562, %v1626
    %1628 = vmatmul.f32.gmra.mxu0 %v1438
    %v1629 = vpop.f32.mrf.mxu0
    %v1630 = vadd.f32 %v1565, %v1629
    %1631 = vmatmul.f32.gmra.mxu0 %v1439
    %v1632 = vpop.f32.mrf.mxu0
    %v1633 = vadd.f32 %v1568, %v1632
    %1634 = vmatmul.f32.gmra.mxu0 %v1440
    %v1635 = vpop.f32.mrf.mxu0
    %v1636 = vadd.f32 %v1571, %v1635
    %1637 = vmatmul.f32.gmra.mxu0 %v1441
    %v1638 = vpop.f32.mrf.mxu0
    %v1639 = vadd.f32 %v1574, %v1638
    %1640 = vmatmul.f32.gmra.mxu0 %v1442
    %v1641 = vpop.f32.mrf.mxu0
    %v1642 = vadd.f32 %v1577, %v1641
    %1643 = vmatmul.f32.gmra.mxu0 %v1443
    %v1644 = vpop.f32.mrf.mxu0
    %v1645 = vadd.f32 %v1580, %v1644
    %1646 = vmatmul.f32.gmra.mxu0 %v1444
    %v1647 = vpop.f32.mrf.mxu0
    %v1648 = vadd.f32 %v1583, %v1647
    %1649 = vmatmul.f32.gmra.mxu0 %v1445
    %v1650 = vpop.f32.mrf.mxu0
    %v1651 = vadd.f32 %v1586, %v1650
    %1652 = vmatmul.f32.gmra.mxu0 %v1446
    %v1653 = vpop.f32.mrf.mxu0
    %v1654 = vadd.f32 %v1589, %v1653
    %1655 = vmatmul.f32.gmra.mxu0 %v1447
    %v1656 = vpop.f32.mrf.mxu0
    %v1657 = vadd.f32 %v1592, %v1656
    %1658 = vdwg.mxu0
    %s1659 = scalar_lea.vmem [#allocation7], 256
    %v1660 = vld [vmem:[%s1659] sm:$0xff]
    %v1661 = vld [vmem:[%s1659 + $0x8] sm:$0xff]
    %v1662 = vld [vmem:[%s1659 + $0x10] sm:$0xff]
    %v1663 = vld [vmem:[%s1659 + $0x18] sm:$0xff]
    %v1664 = vld [vmem:[%s1659 + $0x20] sm:$0xff]
    %v1665 = vld [vmem:[%s1659 + $0x28] sm:$0xff]
    %v1666 = vld [vmem:[%s1659 + $0x30] sm:$0xff]
    %v1667 = vld [vmem:[%s1659 + $0x38] sm:$0xff]
    %v1668 = vld [vmem:[%s1659 + $0x40] sm:$0xff]
    %v1669 = vld [vmem:[%s1659 + $0x48] sm:$0xff]
    %v1670 = vld [vmem:[%s1659 + $0x50] sm:$0xff]
    %v1671 = vld [vmem:[%s1659 + $0x58] sm:$0xff]
    %v1672 = vld [vmem:[%s1659 + $0x60] sm:$0xff]
    %v1673 = vld [vmem:[%s1659 + $0x68] sm:$0xff]
    %v1674 = vld [vmem:[%s1659 + $0x70] sm:$0xff]
    %v1675 = vld [vmem:[%s1659 + $0x78] sm:$0xff]
    %1676 = vmatpush.msra.mxu0 %v1675
    %1677 = vmatpush.msra.mxu0 %v1674
    %1678 = vmatpush.msra.mxu0 %v1673
    %1679 = vmatpush.msra.mxu0 %v1672
    %1680 = vmatpush.msra.mxu0 %v1671
    %1681 = vmatpush.msra.mxu0 %v1670
    %1682 = vmatpush.msra.mxu0 %v1669
    %1683 = vmatpush.msra.mxu0 %v1668
    %1684 = vmatpush.msra.mxu0 %v1667
    %1685 = vmatpush.msra.mxu0 %v1666
    %1686 = vmatpush.msra.mxu0 %v1665
    %1687 = vmatpush.msra.mxu0 %v1664
    %1688 = vmatpush.msra.mxu0 %v1663
    %1689 = vmatpush.msra.mxu0 %v1662
    %1690 = vmatpush.msra.mxu0 %v1661
    %1691 = vmatpush.msra.mxu0 %v1660
    %1692 = vmatmul.f32.gmra.mxu0 %v1384
    %v1693 = vpop.f32.mrf.mxu0
    %v1694 = vadd.f32 0.0, %v1693
    %1695 = vmatmul.f32.gmra.mxu0 %v1385
    %v1696 = vpop.f32.mrf.mxu0
    %v1697 = vadd.f32 0.0, %v1696
    %1698 = vmatmul.f32.gmra.mxu0 %v1386
    %v1699 = vpop.f32.mrf.mxu0
    %v1700 = vadd.f32 0.0, %v1699
    %1701 = vmatmul.f32.gmra.mxu0 %v1387
    %v1702 = vpop.f32.mrf.mxu0
    %v1703 = vadd.f32 0.0, %v1702
    %1704 = vmatmul.f32.gmra.mxu0 %v1388
    %v1705 = vpop.f32.mrf.mxu0
    %v1706 = vadd.f32 0.0, %v1705
    %1707 = vmatmul.f32.gmra.mxu0 %v1389
    %v1708 = vpop.f32.mrf.mxu0
    %v1709 = vadd.f32 0.0, %v1708
    %1710 = vmatmul.f32.gmra.mxu0 %v1390
    %v1711 = vpop.f32.mrf.mxu0
    %v1712 = vadd.f32 0.0, %v1711
    %1713 = vmatmul.f32.gmra.mxu0 %v1391
    %v1714 = vpop.f32.mrf.mxu0
    %v1715 = vadd.f32 0.0, %v1714
    %1716 = vmatmul.f32.gmra.mxu0 %v1392
    %v1717 = vpop.f32.mrf.mxu0
    %v1718 = vadd.f32 0.0, %v1717
    %1719 = vmatmul.f32.gmra.mxu0 %v1393
    %v1720 = vpop.f32.mrf.mxu0
    %v1721 = vadd.f32 0.0, %v1720
    %1722 = vmatmul.f32.gmra.mxu0 %v1394
    %v1723 = vpop.f32.mrf.mxu0
    %v1724 = vadd.f32 0.0, %v1723
    %1725 = vmatmul.f32.gmra.mxu0 %v1395
    %v1726 = vpop.f32.mrf.mxu0
    %v1727 = vadd.f32 0.0, %v1726
    %1728 = vmatmul.f32.gmra.mxu0 %v1396
    %v1729 = vpop.f32.mrf.mxu0
    %v1730 = vadd.f32 0.0, %v1729
    %1731 = vmatmul.f32.gmra.mxu0 %v1397
    %v1732 = vpop.f32.mrf.mxu0
    %v1733 = vadd.f32 0.0, %v1732
    %1734 = vmatmul.f32.gmra.mxu0 %v1398
    %v1735 = vpop.f32.mrf.mxu0
    %v1736 = vadd.f32 0.0, %v1735
    %1737 = vmatmul.f32.gmra.mxu0 %v1399
    %v1738 = vpop.f32.mrf.mxu0
    %v1739 = vadd.f32 0.0, %v1738
    %1740 = vdwg.mxu0
    %v1741 = vadd.f32 %v1612, %v1694
    %v1742 = vadd.f32 %v1615, %v1697
    %v1743 = vadd.f32 %v1618, %v1700
    %v1744 = vadd.f32 %v1621, %v1703
    %v1745 = vadd.f32 %v1624, %v1706
    %v1746 = vadd.f32 %v1627, %v1709
    %v1747 = vadd.f32 %v1630, %v1712
    %v1748 = vadd.f32 %v1633, %v1715
    %v1749 = vadd.f32 %v1636, %v1718
    %v1750 = vadd.f32 %v1639, %v1721
    %v1751 = vadd.f32 %v1642, %v1724
    %v1752 = vadd.f32 %v1645, %v1727
    %v1753 = vadd.f32 %v1648, %v1730
    %v1754 = vadd.f32 %v1651, %v1733
    %v1755 = vadd.f32 %v1654, %v1736
    %v1756 = vadd.f32 %v1657, %v1739
    %v1757 = vrot.slane %v1384, 1
    %v1758 = vrot.slane %v1385, 1
    %v1759 = vrot.slane %v1386, 1
    %v1760 = vrot.slane %v1387, 1
    %v1761 = vrot.slane %v1388, 1
    %v1762 = vrot.slane %v1389, 1
    %v1763 = vrot.slane %v1390, 1
    %v1764 = vrot.slane %v1391, 1
    %v1765 = vrot.slane %v1392, 1
    %v1766 = vrot.slane %v1393, 1
    %v1767 = vrot.slane %v1394, 1
    %v1768 = vrot.slane %v1395, 1
    %v1769 = vrot.slane %v1396, 1
    %v1770 = vrot.slane %v1397, 1
    %v1771 = vrot.slane %v1398, 1
    %v1772 = vrot.slane %v1399, 1
    %v1773 = vsel %vm786, %v1771, %v1772
    %v1774 = vsel %vm786, %v1770, %v1771
    %v1775 = vsel %vm786, %v1769, %v1770
    %v1776 = vsel %vm786, %v1768, %v1769
    %v1777 = vsel %vm786, %v1767, %v1768
    %v1778 = vsel %vm786, %v1766, %v1767
    %v1779 = vsel %vm786, %v1765, %v1766
    %v1780 = vsel %vm786, %v1764, %v1765
    %v1781 = vsel %vm786, %v1763, %v1764
    %v1782 = vsel %vm786, %v1762, %v1763
    %v1783 = vsel %vm786, %v1761, %v1762
    %v1784 = vsel %vm786, %v1760, %v1761
    %v1785 = vsel %vm786, %v1759, %v1760
    %v1786 = vsel %vm786, %v1758, %v1759
    %v1787 = vsel %vm786, %v1757, %v1758
    %v1788 = vsel %vm786, %v1772, %v1757
    %v1789 = vsel %vm883, %v1787, 0.0
    %v1790 = vsel %vm884, %v1786, 0.0
    %v1791 = vsel %vm885, %v1785, 0.0
    %v1792 = vsel %vm886, %v1784, 0.0
    %v1793 = vsel %vm887, %v1783, 0.0
    %v1794 = vsel %vm888, %v1782, 0.0
    %v1795 = vsel %vm889, %v1781, 0.0
    %v1796 = vsel %vm890, %v1780, 0.0
    %v1797 = vsel %vm891, %v1779, 0.0
    %v1798 = vsel %vm892, %v1778, 0.0
    %v1799 = vsel %vm893, %v1777, 0.0
    %v1800 = vsel %vm894, %v1776, 0.0
    %v1801 = vsel %vm895, %v1775, 0.0
    %v1802 = vsel %vm896, %v1774, 0.0
    %v1803 = vsel %vm897, %v1773, 0.0
    %v1804 = vsel %vm898, %v1788, 0.0
    %s1805 = scalar_lea.vmem [#allocation7], 384
    %v1806 = vld [vmem:[%s1805] sm:$0xff]
    %v1807 = vld [vmem:[%s1805 + $0x8] sm:$0xff]
    %v1808 = vld [vmem:[%s1805 + $0x10] sm:$0xff]
    %v1809 = vld [vmem:[%s1805 + $0x18] sm:$0xff]
    %v1810 = vld [vmem:[%s1805 + $0x20] sm:$0xff]
    %v1811 = vld [vmem:[%s1805 + $0x28] sm:$0xff]
    %v1812 = vld [vmem:[%s1805 + $0x30] sm:$0xff]
    %v1813 = vld [vmem:[%s1805 + $0x38] sm:$0xff]
    %v1814 = vld [vmem:[%s1805 + $0x40] sm:$0xff]
    %v1815 = vld [vmem:[%s1805 + $0x48] sm:$0xff]
    %v1816 = vld [vmem:[%s1805 + $0x50] sm:$0xff]
    %v1817 = vld [vmem:[%s1805 + $0x58] sm:$0xff]
    %v1818 = vld [vmem:[%s1805 + $0x60] sm:$0xff]
    %v1819 = vld [vmem:[%s1805 + $0x68] sm:$0xff]
    %v1820 = vld [vmem:[%s1805 + $0x70] sm:$0xff]
    %v1821 = vld [vmem:[%s1805 + $0x78] sm:$0xff]
    %1822 = vmatpush.msra.mxu0 %v1821
    %1823 = vmatpush.msra.mxu0 %v1820
    %1824 = vmatpush.msra.mxu0 %v1819
    %1825 = vmatpush.msra.mxu0 %v1818
    %1826 = vmatpush.msra.mxu0 %v1817
    %1827 = vmatpush.msra.mxu0 %v1816
    %1828 = vmatpush.msra.mxu0 %v1815
    %1829 = vmatpush.msra.mxu0 %v1814
    %1830 = vmatpush.msra.mxu0 %v1813
    %1831 = vmatpush.msra.mxu0 %v1812
    %1832 = vmatpush.msra.mxu0 %v1811
    %1833 = vmatpush.msra.mxu0 %v1810
    %1834 = vmatpush.msra.mxu0 %v1809
    %1835 = vmatpush.msra.mxu0 %v1808
    %1836 = vmatpush.msra.mxu0 %v1807
    %1837 = vmatpush.msra.mxu0 %v1806
    %1838 = vmatmul.f32.gmra.mxu0 %v1789
    %v1839 = vpop.f32.mrf.mxu0
    %v1840 = vadd.f32 0.0, %v1839
    %1841 = vmatmul.f32.gmra.mxu0 %v1790
    %v1842 = vpop.f32.mrf.mxu0
    %v1843 = vadd.f32 0.0, %v1842
    %1844 = vmatmul.f32.gmra.mxu0 %v1791
    %v1845 = vpop.f32.mrf.mxu0
    %v1846 = vadd.f32 0.0, %v1845
    %1847 = vmatmul.f32.gmra.mxu0 %v1792
    %v1848 = vpop.f32.mrf.mxu0
    %v1849 = vadd.f32 0.0, %v1848
    %1850 = vmatmul.f32.gmra.mxu0 %v1793
    %v1851 = vpop.f32.mrf.mxu0
    %v1852 = vadd.f32 0.0, %v1851
    %1853 = vmatmul.f32.gmra.mxu0 %v1794
    %v1854 = vpop.f32.mrf.mxu0
    %v1855 = vadd.f32 0.0, %v1854
    %1856 = vmatmul.f32.gmra.mxu0 %v1795
    %v1857 = vpop.f32.mrf.mxu0
    %v1858 = vadd.f32 0.0, %v1857
    %1859 = vmatmul.f32.gmra.mxu0 %v1796
    %v1860 = vpop.f32.mrf.mxu0
    %v1861 = vadd.f32 0.0, %v1860
    %1862 = vmatmul.f32.gmra.mxu0 %v1797
    %v1863 = vpop.f32.mrf.mxu0
    %v1864 = vadd.f32 0.0, %v1863
    %1865 = vmatmul.f32.gmra.mxu0 %v1798
    %v1866 = vpop.f32.mrf.mxu0
    %v1867 = vadd.f32 0.0, %v1866
    %1868 = vmatmul.f32.gmra.mxu0 %v1799
    %v1869 = vpop.f32.mrf.mxu0
    %v1870 = vadd.f32 0.0, %v1869
    %1871 = vmatmul.f32.gmra.mxu0 %v1800
    %v1872 = vpop.f32.mrf.mxu0
    %v1873 = vadd.f32 0.0, %v1872
    %1874 = vmatmul.f32.gmra.mxu0 %v1801
    %v1875 = vpop.f32.mrf.mxu0
    %v1876 = vadd.f32 0.0, %v1875
    %1877 = vmatmul.f32.gmra.mxu0 %v1802
    %v1878 = vpop.f32.mrf.mxu0
    %v1879 = vadd.f32 0.0, %v1878
    %1880 = vmatmul.f32.gmra.mxu0 %v1803
    %v1881 = vpop.f32.mrf.mxu0
    %v1882 = vadd.f32 0.0, %v1881
    %1883 = vmatmul.f32.gmra.mxu0 %v1804
    %v1884 = vpop.f32.mrf.mxu0
    %v1885 = vadd.f32 0.0, %v1884
    %1886 = vdwg.mxu0
    %v1887 = vadd.f32 %v1741, %v1840
    %v1888 = vadd.f32 %v1742, %v1843
    %v1889 = vadd.f32 %v1743, %v1846
    %v1890 = vadd.f32 %v1744, %v1849
    %v1891 = vadd.f32 %v1745, %v1852
    %v1892 = vadd.f32 %v1746, %v1855
    %v1893 = vadd.f32 %v1747, %v1858
    %v1894 = vadd.f32 %v1748, %v1861
    %v1895 = vadd.f32 %v1749, %v1864
    %v1896 = vadd.f32 %v1750, %v1867
    %v1897 = vadd.f32 %v1751, %v1870
    %v1898 = vadd.f32 %v1752, %v1873
    %v1899 = vadd.f32 %v1753, %v1876
    %v1900 = vadd.f32 %v1754, %v1879
    %v1901 = vadd.f32 %v1755, %v1882
    %v1902 = vadd.f32 %v1756, %v1885
    %v1903 = vrot.slane %v1384, 2
    %v1904 = vrot.slane %v1385, 2
    %v1905 = vrot.slane %v1386, 2
    %v1906 = vrot.slane %v1387, 2
    %v1907 = vrot.slane %v1388, 2
    %v1908 = vrot.slane %v1389, 2
    %v1909 = vrot.slane %v1390, 2
    %v1910 = vrot.slane %v1391, 2
    %v1911 = vrot.slane %v1392, 2
    %v1912 = vrot.slane %v1393, 2
    %v1913 = vrot.slane %v1394, 2
    %v1914 = vrot.slane %v1395, 2
    %v1915 = vrot.slane %v1396, 2
    %v1916 = vrot.slane %v1397, 2
    %v1917 = vrot.slane %v1398, 2
    %v1918 = vrot.slane %v1399, 2
    %v1919 = vsel %vm1029, %v1917, %v1918
    %v1920 = vsel %vm1029, %v1916, %v1917
    %v1921 = vsel %vm1029, %v1915, %v1916
    %v1922 = vsel %vm1029, %v1914, %v1915
    %v1923 = vsel %vm1029, %v1913, %v1914
    %v1924 = vsel %vm1029, %v1912, %v1913
    %v1925 = vsel %vm1029, %v1911, %v1912
    %v1926 = vsel %vm1029, %v1910, %v1911
    %v1927 = vsel %vm1029, %v1909, %v1910
    %v1928 = vsel %vm1029, %v1908, %v1909
    %v1929 = vsel %vm1029, %v1907, %v1908
    %v1930 = vsel %vm1029, %v1906, %v1907
    %v1931 = vsel %vm1029, %v1905, %v1906
    %v1932 = vsel %vm1029, %v1904, %v1905
    %v1933 = vsel %vm1029, %v1903, %v1904
    %v1934 = vsel %vm1029, %v1918, %v1903
    %v1935 = vsel %vm1126, %v1933, 0.0
    %v1936 = vsel %vm1127, %v1932, 0.0
    %v1937 = vsel %vm1128, %v1931, 0.0
    %v1938 = vsel %vm1129, %v1930, 0.0
    %v1939 = vsel %vm1130, %v1929, 0.0
    %v1940 = vsel %vm1131, %v1928, 0.0
    %v1941 = vsel %vm1132, %v1927, 0.0
    %v1942 = vsel %vm1133, %v1926, 0.0
    %v1943 = vsel %vm1134, %v1925, 0.0
    %v1944 = vsel %vm1135, %v1924, 0.0
    %v1945 = vsel %vm1136, %v1923, 0.0
    %v1946 = vsel %vm1137, %v1922, 0.0
    %v1947 = vsel %vm1138, %v1921, 0.0
    %v1948 = vsel %vm1139, %v1920, 0.0
    %v1949 = vsel %vm1140, %v1919, 0.0
    %v1950 = vsel %vm1141, %v1934, 0.0
    %s1951 = scalar_lea.vmem [#allocation7], 512
    %v1952 = vld [vmem:[%s1951] sm:$0xff]
    %v1953 = vld [vmem:[%s1951 + $0x8] sm:$0xff]
    %v1954 = vld [vmem:[%s1951 + $0x10] sm:$0xff]
    %v1955 = vld [vmem:[%s1951 + $0x18] sm:$0xff]
    %v1956 = vld [vmem:[%s1951 + $0x20] sm:$0xff]
    %v1957 = vld [vmem:[%s1951 + $0x28] sm:$0xff]
    %v1958 = vld [vmem:[%s1951 + $0x30] sm:$0xff]
    %v1959 = vld [vmem:[%s1951 + $0x38] sm:$0xff]
    %v1960 = vld [vmem:[%s1951 + $0x40] sm:$0xff]
    %v1961 = vld [vmem:[%s1951 + $0x48] sm:$0xff]
    %v1962 = vld [vmem:[%s1951 + $0x50] sm:$0xff]
    %v1963 = vld [vmem:[%s1951 + $0x58] sm:$0xff]
    %v1964 = vld [vmem:[%s1951 + $0x60] sm:$0xff]
    %v1965 = vld [vmem:[%s1951 + $0x68] sm:$0xff]
    %v1966 = vld [vmem:[%s1951 + $0x70] sm:$0xff]
    %v1967 = vld [vmem:[%s1951 + $0x78] sm:$0xff]
    %1968 = vmatpush.msra.mxu0 %v1967
    %1969 = vmatpush.msra.mxu0 %v1966
    %1970 = vmatpush.msra.mxu0 %v1965
    %1971 = vmatpush.msra.mxu0 %v1964
    %1972 = vmatpush.msra.mxu0 %v1963
    %1973 = vmatpush.msra.mxu0 %v1962
    %1974 = vmatpush.msra.mxu0 %v1961
    %1975 = vmatpush.msra.mxu0 %v1960
    %1976 = vmatpush.msra.mxu0 %v1959
    %1977 = vmatpush.msra.mxu0 %v1958
    %1978 = vmatpush.msra.mxu0 %v1957
    %1979 = vmatpush.msra.mxu0 %v1956
    %1980 = vmatpush.msra.mxu0 %v1955
    %1981 = vmatpush.msra.mxu0 %v1954
    %1982 = vmatpush.msra.mxu0 %v1953
    %1983 = vmatpush.msra.mxu0 %v1952
    %1984 = vmatmul.f32.gmra.mxu0 %v1935
    %v1985 = vpop.f32.mrf.mxu0
    %v1986 = vadd.f32 0.0, %v1985
    %1987 = vmatmul.f32.gmra.mxu0 %v1936
    %v1988 = vpop.f32.mrf.mxu0
    %v1989 = vadd.f32 0.0, %v1988
    %1990 = vmatmul.f32.gmra.mxu0 %v1937
    %v1991 = vpop.f32.mrf.mxu0
    %v1992 = vadd.f32 0.0, %v1991
    %1993 = vmatmul.f32.gmra.mxu0 %v1938
    %v1994 = vpop.f32.mrf.mxu0
    %v1995 = vadd.f32 0.0, %v1994
    %1996 = vmatmul.f32.gmra.mxu0 %v1939
    %v1997 = vpop.f32.mrf.mxu0
    %v1998 = vadd.f32 0.0, %v1997
    %1999 = vmatmul.f32.gmra.mxu0 %v1940
    %v2000 = vpop.f32.mrf.mxu0
    %v2001 = vadd.f32 0.0, %v2000
    %2002 = vmatmul.f32.gmra.mxu0 %v1941
    %v2003 = vpop.f32.mrf.mxu0
    %v2004 = vadd.f32 0.0, %v2003
    %2005 = vmatmul.f32.gmra.mxu0 %v1942
    %v2006 = vpop.f32.mrf.mxu0
    %v2007 = vadd.f32 0.0, %v2006
    %2008 = vmatmul.f32.gmra.mxu0 %v1943
    %v2009 = vpop.f32.mrf.mxu0
    %v2010 = vadd.f32 0.0, %v2009
    %2011 = vmatmul.f32.gmra.mxu0 %v1944
    %v2012 = vpop.f32.mrf.mxu0
    %v2013 = vadd.f32 0.0, %v2012
    %2014 = vmatmul.f32.gmra.mxu0 %v1945
    %v2015 = vpop.f32.mrf.mxu0
    %v2016 = vadd.f32 0.0, %v2015
    %2017 = vmatmul.f32.gmra.mxu0 %v1946
    %v2018 = vpop.f32.mrf.mxu0
    %v2019 = vadd.f32 0.0, %v2018
    %2020 = vmatmul.f32.gmra.mxu0 %v1947
    %v2021 = vpop.f32.mrf.mxu0
    %v2022 = vadd.f32 0.0, %v2021
    %2023 = vmatmul.f32.gmra.mxu0 %v1948
    %v2024 = vpop.f32.mrf.mxu0
    %v2025 = vadd.f32 0.0, %v2024
    %2026 = vmatmul.f32.gmra.mxu0 %v1949
    %v2027 = vpop.f32.mrf.mxu0
    %v2028 = vadd.f32 0.0, %v2027
    %2029 = vmatmul.f32.gmra.mxu0 %v1950
    %v2030 = vpop.f32.mrf.mxu0
    %v2031 = vadd.f32 0.0, %v2030
    %2032 = vdwg.mxu0
    %v2033 = vadd.f32 %v1887, %v1986
    %v2034 = vadd.f32 %v1888, %v1989
    %v2035 = vadd.f32 %v1889, %v1992
    %v2036 = vadd.f32 %v1890, %v1995
    %v2037 = vadd.f32 %v1891, %v1998
    %v2038 = vadd.f32 %v1892, %v2001
    %v2039 = vadd.f32 %v1893, %v2004
    %v2040 = vadd.f32 %v1894, %v2007
    %v2041 = vadd.f32 %v1895, %v2010
    %v2042 = vadd.f32 %v1896, %v2013
    %v2043 = vadd.f32 %v1897, %v2016
    %v2044 = vadd.f32 %v1898, %v2019
    %v2045 = vadd.f32 %v1899, %v2022
    %v2046 = vadd.f32 %v1900, %v2025
    %v2047 = vadd.f32 %v1901, %v2028
    %v2048 = vadd.f32 %v1902, %v2031
    %v2049 = vadd.f32 %v2033, %v2034
    %v2050 = vadd.f32 %v2049, %v2035
    %v2051 = vadd.f32 %v2050, %v2036
    %v2052 = vadd.f32 %v2051, %v2037
    %v2053 = vadd.f32 %v2052, %v2038
    %v2054 = vadd.f32 %v2053, %v2039
    %v2055 = vadd.f32 %v2054, %v2040
    %v2056 = vadd.f32 %v2055, %v2041
    %v2057 = vadd.f32 %v2056, %v2042
    %v2058 = vadd.f32 %v2057, %v2043
    %v2059 = vadd.f32 %v2058, %v2044
    %v2060 = vadd.f32 %v2059, %v2045
    %v2061 = vadd.f32 %v2060, %v2046
    %v2062 = vadd.f32 %v2061, %v2047
    %v2063 = vadd.f32 %v2062, %v2048
    %v2064 = vrot.slane %v2063, 4
    %v2065 = vadd.f32 %v2063, %v2064
    %v2066 = vrot.slane %v2065, 2
    %v2067 = vadd.f32 %v2065, %v2066
    %v2068 = vrot.slane %v2067, 1
    %v2069 = vadd.f32 %v2067, %v2068
    %v2070 = vmul.f32 %v2069, 0.0078125
    %v2071 = vsub.f32 %v2033, %v2070
    %v2072 = vsub.f32 %v2034, %v2070
    %v2073 = vsub.f32 %v2035, %v2070
    %v2074 = vsub.f32 %v2036, %v2070
    %v2075 = vsub.f32 %v2037, %v2070
    %v2076 = vsub.f32 %v2038, %v2070
    %v2077 = vsub.f32 %v2039, %v2070
    %v2078 = vsub.f32 %v2040, %v2070
    %v2079 = vsub.f32 %v2041, %v2070
    %v2080 = vsub.f32 %v2042, %v2070
    %v2081 = vsub.f32 %v2043, %v2070
    %v2082 = vsub.f32 %v2044, %v2070
    %v2083 = vsub.f32 %v2045, %v2070
    %v2084 = vsub.f32 %v2046, %v2070
    %v2085 = vsub.f32 %v2047, %v2070
    %v2086 = vsub.f32 %v2048, %v2070
    %v2087 = vmul.f32 %v2071, %v2071
    %v2088 = vmul.f32 %v2072, %v2072
    %v2089 = vmul.f32 %v2073, %v2073
    %v2090 = vmul.f32 %v2074, %v2074
    %v2091 = vmul.f32 %v2075, %v2075
    %v2092 = vmul.f32 %v2076, %v2076
    %v2093 = vmul.f32 %v2077, %v2077
    %v2094 = vmul.f32 %v2078, %v2078
    %v2095 = vmul.f32 %v2079, %v2079
    %v2096 = vmul.f32 %v2080, %v2080
    %v2097 = vmul.f32 %v2081, %v2081
    %v2098 = vmul.f32 %v2082, %v2082
    %v2099 = vmul.f32 %v2083, %v2083
    %v2100 = vmul.f32 %v2084, %v2084
    %v2101 = vmul.f32 %v2085, %v2085
    %v2102 = vmul.f32 %v2086, %v2086
    %v2103 = vadd.f32 %v2087, %v2088
    %v2104 = vadd.f32 %v2103, %v2089
    %v2105 = vadd.f32 %v2104, %v2090
    %v2106 = vadd.f32 %v2105, %v2091
    %v2107 = vadd.f32 %v2106, %v2092
    %v2108 = vadd.f32 %v2107, %v2093
    %v2109 = vadd.f32 %v2108, %v2094
    %v2110 = vadd.f32 %v2109, %v2095
    %v2111 = vadd.f32 %v2110, %v2096
    %v2112 = vadd.f32 %v2111, %v2097
    %v2113 = vadd.f32 %v2112, %v2098
    %v2114 = vadd.f32 %v2113, %v2099
    %v2115 = vadd.f32 %v2114, %v2100
    %v2116 = vadd.f32 %v2115, %v2101
    %v2117 = vadd.f32 %v2116, %v2102
    %v2118 = vrot.slane %v2117, 4
    %v2119 = vadd.f32 %v2117, %v2118
    %v2120 = vrot.slane %v2119, 2
    %v2121 = vadd.f32 %v2119, %v2120
    %v2122 = vrot.slane %v2121, 1
    %v2123 = vadd.f32 %v2121, %v2122
    %v2124 = vmul.f32 %v2123, 0.0078125
    %v2125 = vld [vmem:[%s5] sm:$0x1]
    %v2126 = vadd.f32 %v2124, 1e-05
    %v2127 = vrsqrt.pop %v2126
    %v2128 = vmul.f32 %v2127, %v2126
    %v2129 = vmul.f32 %v2128, %v2127
    %v2130 = vmul.f32 0.5, %v2129
    %v2131 = vsub.f32 1.5, %v2130
    %v2132 = vmul.f32 %v2127, %v2131
    %vm2133 = vweird.f32 %v2126
    %vm2134 = vweird.f32 %v2127
    %vm2135 = vmor %vm2133, %vm2134
    %v2136 = vsel %vm2135, %v2127, %v2132
    %v2137 = vmul.f32 %v2125, %v2136
    %v2139 = vperm.slane %v2137, 0
    %v2141 = vmul.f32 %v2071, %v2139
    %v2142 = vmul.f32 %v2072, %v2139
    %v2143 = vmul.f32 %v2073, %v2139
    %v2144 = vmul.f32 %v2074, %v2139
    %v2145 = vmul.f32 %v2075, %v2139
    %v2146 = vmul.f32 %v2076, %v2139
    %v2147 = vmul.f32 %v2077, %v2139
    %v2148 = vmul.f32 %v2078, %v2139
    %v2149 = vmul.f32 %v2079, %v2139
    %v2150 = vmul.f32 %v2080, %v2139
    %v2151 = vmul.f32 %v2081, %v2139
    %v2152 = vmul.f32 %v2082, %v2139
    %v2153 = vmul.f32 %v2083, %v2139
    %v2154 = vmul.f32 %v2084, %v2139
    %v2155 = vmul.f32 %v2085, %v2139
    %v2156 = vmul.f32 %v2086, %v2139
    %v2157 = vld [vmem:[%s6] sm:$0x1]
    %v2159 = vperm.slane %v2157, 0
    %v2161 = vadd.f32 %v2141, %v2159
    %v2162 = vadd.f32 %v2142, %v2159
    %v2163 = vadd.f32 %v2143, %v2159
    %v2164 = vadd.f32 %v2144, %v2159
    %v2165 = vadd.f32 %v2145, %v2159
    %v2166 = vadd.f32 %v2146, %v2159
    %v2167 = vadd.f32 %v2147, %v2159
    %v2168 = vadd.f32 %v2148, %v2159
    %v2169 = vadd.f32 %v2149, %v2159
    %v2170 = vadd.f32 %v2150, %v2159
    %v2171 = vadd.f32 %v2151, %v2159
    %v2172 = vadd.f32 %v2152, %v2159
    %v2173 = vadd.f32 %v2153, %v2159
    %v2174 = vadd.f32 %v2154, %v2159
    %v2175 = vadd.f32 %v2155, %v2159
    %v2176 = vadd.f32 %v2156, %v2159
    %v2177 = vmax.f32 %v2161, 0.0
    %v2178 = vmax.f32 %v2162, 0.0
    %v2179 = vmax.f32 %v2163, 0.0
    %v2180 = vmax.f32 %v2164, 0.0
    %v2181 = vmax.f32 %v2165, 0.0
    %v2182 = vmax.f32 %v2166, 0.0
    %v2183 = vmax.f32 %v2167, 0.0
    %v2184 = vmax.f32 %v2168, 0.0
    %v2185 = vmax.f32 %v2169, 0.0
    %v2186 = vmax.f32 %v2170, 0.0
    %v2187 = vmax.f32 %v2171, 0.0
    %v2188 = vmax.f32 %v2172, 0.0
    %v2189 = vmax.f32 %v2173, 0.0
    %v2190 = vmax.f32 %v2174, 0.0
    %v2191 = vmax.f32 %v2175, 0.0
    %v2192 = vmax.f32 %v2176, 0.0
    %v2193 = vadd.f32 %v2177, %v74
    %v2194 = vadd.f32 %v2178, %v75
    %v2195 = vadd.f32 %v2179, %v76
    %v2196 = vadd.f32 %v2180, %v77
    %v2197 = vadd.f32 %v2181, %v78
    %v2198 = vadd.f32 %v2182, %v79
    %v2199 = vadd.f32 %v2183, %v80
    %v2200 = vadd.f32 %v2184, %v81
    %v2201 = vadd.f32 %v2185, %v82
    %v2202 = vadd.f32 %v2186, %v83
    %v2203 = vadd.f32 %v2187, %v84
    %v2204 = vadd.f32 %v2188, %v85
    %v2205 = vadd.f32 %v2189, %v86
    %v2206 = vadd.f32 %v2190, %v87
    %v2207 = vadd.f32 %v2191, %v88
    %v2208 = vadd.f32 %v2192, %v89
    %2209 = vst [vmem:[#allocation8] sm:$0xff] %v2193
    %2210 = vst [vmem:[#allocation8 + $0x8] sm:$0xff] %v2194
    %2211 = vst [vmem:[#allocation8 + $0x10] sm:$0xff] %v2195
    %2212 = vst [vmem:[#allocation8 + $0x18] sm:$0xff] %v2196
    %2213 = vst [vmem:[#allocation8 + $0x20] sm:$0xff] %v2197
    %2214 = vst [vmem:[#allocation8 + $0x28] sm:$0xff] %v2198
    %2215 = vst [vmem:[#allocation8 + $0x30] sm:$0xff] %v2199
    %2216 = vst [vmem:[#allocation8 + $0x38] sm:$0xff] %v2200
    %2217 = vst [vmem:[#allocation8 + $0x40] sm:$0xff] %v2201
    %2218 = vst [vmem:[#allocation8 + $0x48] sm:$0xff] %v2202
    %2219 = vst [vmem:[#allocation8 + $0x50] sm:$0xff] %v2203
    %2220 = vst [vmem:[#allocation8 + $0x58] sm:$0xff] %v2204
    %2221 = vst [vmem:[#allocation8 + $0x60] sm:$0xff] %v2205
    %2222 = vst [vmem:[#allocation8 + $0x68] sm:$0xff] %v2206
    %2223 = vst [vmem:[#allocation8 + $0x70] sm:$0xff] %v2207
    %2224 = vst [vmem:[#allocation8 + $0x78] sm:$0xff] %v2208
    // Predicated region
    $region42: #{tpu_custom_call.1} parent=1 // pred_check
      _
    $region43: #{tpu_custom_call.1} parent=1 // pred_check_branch
      %2226 = sbr.rel (0) target = $region45
    $region44: #{tpu_custom_call.1} parent=1 // pred_region
      %2228 = vsyncadd [#allocation4], 0
      %s2229 = sshll.u32 [#allocation8], 4
      %s2230 = int_to_ptr.vmem [resolvable:$true] %s2229
      %s2231 = sshll.u32 %s7, 4
      %s2232 = int_to_ptr.hbm [resolvable:$true] %s2231
      %2237 = dma.vmem_to_hbm [thread:$0]  %s2230, 2048, %s2232, [#allocation4], 128, 128, 8
    $region45: #{tpu_custom_call.1} parent=1 // pred_fallthru
      _
    // Predicated region
    $region46: #{tpu_custom_call.1} parent=1 // pred_check
      _
    $region47: #{tpu_custom_call.1} parent=1 // pred_check_branch
      %2239 = sbr.rel (0) target = $region49
    $region48: #{tpu_custom_call.1} parent=1 // pred_region
      %2241 = dma.done [#allocation4], 2048
    $region49: #{tpu_custom_call.1} parent=1 // pred_fallthru
      _
    %2242 = vsyncpa [#allocation3], 1
    %2243 = vsyncpa [#allocation6], 1
    %2244 = vsyncpa [#allocation4], 1

</llo_original>
